<compile_context>
chip_gen: v7x
topology: tpu7x:2x2x1
jax: 0.10.0
libtpu: 0.0.40
codegen_flags: <defaults>
</compile_context>

<pallas_src>
import functools

import jax
import jax.numpy as jnp
from jax.experimental import pallas as pl
from jax.experimental.pallas import tpu as pltpu

EPS = 1e-5


# ----------------------------------------------------------------------------
# Shared helpers (run inside kernels)
# ----------------------------------------------------------------------------
def _shifted_taps(a, hl, hr):
    """a: (C, L) f32; hl/hr: (C, 1) halo columns (already valid / zeroed).

    Returns (a[l-1], a[l], a[l+1]) built with pltpu.roll + a 1-column boundary
    fix (no halo scratch copy, no lane-unaligned slices)."""
    _, L = a.shape
    col = jax.lax.broadcasted_iota(jnp.int32, (1, L), 1)
    a_m1 = jnp.where(col == 0, hl, pltpu.roll(a, 1, axis=1))        # x[l-1]
    a_p1 = jnp.where(col == L - 1, hr, pltpu.roll(a, L - 1, axis=1))  # x[l+1]
    return a_m1, a, a_p1


def _conv3_dot(a, hl, hr, w):
    """k=3 'same' conv as 3 shifted MXU matmuls.
    a: (C_in, L) f32; w: (C_out, 3*C_in) f32 with columns [k*C_in + ci]."""
    c_in = a.shape[0]
    a_m1, a_0, a_p1 = _shifted_taps(a, hl, hr)
    w0 = w[:, 0:c_in]
    w1 = w[:, c_in:2 * c_in]
    w2 = w[:, 2 * c_in:3 * c_in]
    return (jnp.dot(w1, a_0, preferred_element_type=jnp.float32)
            + jnp.dot(w0, a_m1, preferred_element_type=jnp.float32)
            + jnp.dot(w2, a_p1, preferred_element_type=jnp.float32))


def _conv3_mac(a, hl, hr, w):
    """Same conv as unrolled VPU broadcast-MACs (used only on the tiny fused
    path, where the MXU latency is not amortized)."""
    c_in = a.shape[0]
    taps = _shifted_taps(a, hl, hr)
    out = None
    for k in range(3):
        for ci in range(c_in):
            w_col = w[:, k * c_in + ci: k * c_in + ci + 1]       # (C_out, 1)
            term = w_col * taps[k][ci:ci + 1, :]                 # (C_out, L)
            out = term if out is None else out + term
    return out


def _scale_shift(ssum, sqsum, count, gamma, beta):
    """Fold training-mode BN (biased var) into per-channel scale/shift."""
    mean = ssum / count
    var = jnp.maximum(sqsum / count - mean * mean, 0.0)
    scale = gamma * jax.lax.rsqrt(var + EPS)
    return scale, beta - mean * scale


def _scale_shift_from_stats(st, count, gamma, beta):
    """st: (N, C, 2) per-batch-row (sum, sumsq) partials."""
    tot = jnp.sum(st, axis=0)                                    # (C, 2)
    return _scale_shift(tot[:, 0:1], tot[:, 1:2], count, gamma, beta)


# ----------------------------------------------------------------------------
# Fused single-call kernel (small problems)
# ----------------------------------------------------------------------------
def _fused_small_kernel(x_ref, w1_ref, g1_ref, b1_ref, w2_ref, g2_ref, b2_ref,
                        o_ref, *, count):
    N, Cin, _ = x_ref.shape
    Cmid = w1_ref.shape[0]
    Cout = w2_ref.shape[0]
    w1 = w1_ref[...]
    w2 = w2_ref[...]
    z_in = jnp.zeros((Cin, 1), jnp.float32)
    z_mid = jnp.zeros((Cmid, 1), jnp.float32)

    # stage 1: conv1 + BN1 batch stats (whole batch resident in VMEM)
    hs = []
    s1 = jnp.zeros((Cmid, 1), jnp.float32)
    q1 = jnp.zeros((Cmid, 1), jnp.float32)
    for n in range(N):
        h = _conv3_mac(x_ref[n].astype(jnp.float32), z_in, z_in, w1)
        hs.append(h)
        s1 = s1 + jnp.sum(h, axis=1, keepdims=True)
        q1 = q1 + jnp.sum(h * h, axis=1, keepdims=True)
    sc1, sh1 = _scale_shift(s1, q1, count, g1_ref[...], b1_ref[...])

    # stage 2: BN1 + ReLU + conv2 + BN2 batch stats
    ys = []
    s2 = jnp.zeros((Cout, 1), jnp.float32)
    q2 = jnp.zeros((Cout, 1), jnp.float32)
    for n in range(N):
        a = jnp.maximum(hs[n] * sc1 + sh1, 0.0)
        y = _conv3_mac(a, z_mid, z_mid, w2)
        ys.append(y)
        s2 = s2 + jnp.sum(y, axis=1, keepdims=True)
        q2 = q2 + jnp.sum(y * y, axis=1, keepdims=True)
    sc2, sh2 = _scale_shift(s2, q2, count, g2_ref[...], b2_ref[...])

    # stage 3: BN2 + ReLU, lane-dense NCL store
    for n in range(N):
        o_ref[n] = jnp.maximum(ys[n] * sc2 + sh2, 0.0).astype(o_ref.dtype)


def _double_conv_fused(x, w1r, g1, b1, w2r, g2, b2, Cout):
    N, _, L = x.shape
    kern = functools.partial(_fused_small_kernel, count=float(N * L))
    return pl.pallas_call(
        kern,
        grid=(1,),
        in_specs=[
            pl.BlockSpec(x.shape, lambda i: (0, 0, 0)),
            pl.BlockSpec(w1r.shape, lambda i: (0, 0)),
            pl.BlockSpec(g1.shape, lambda i: (0, 0)),
            pl.BlockSpec(b1.shape, lambda i: (0, 0)),
            pl.BlockSpec(w2r.shape, lambda i: (0, 0)),
            pl.BlockSpec(g2.shape, lambda i: (0, 0)),
            pl.BlockSpec(b2.shape, lambda i: (0, 0)),
        ],
        out_specs=pl.BlockSpec((N, Cout, L), lambda i: (0, 0, 0)),
        out_shape=jax.ShapeDtypeStruct((N, Cout, L), x.dtype),
        compiler_params=pltpu.CompilerParams(dimension_semantics=("arbitrary",)),
    )(x, w1r, g1, b1, w2r, g2, b2)


# ----------------------------------------------------------------------------
# General L-tiled 3-pass pipeline
# ----------------------------------------------------------------------------
def _conv_stats_kernel(x_ref, xe_ref, w_ref, h_ref, st_ref):
    # x_ref : (1, Cin, Lt)   xe_ref : (1, 1, Cin, 2) [left, right halo column]
    # h_ref : (1, Cmid, Lt)  st_ref : (1, Cmid, 2)   (sum, sumsq) accumulator
    t = pl.program_id(1)
    a = x_ref[0].astype(jnp.float32)
    e = xe_ref[0, 0].astype(jnp.float32)            # boundary tiles carry zeros
    h = _conv3_dot(a, e[:, 0:1], e[:, 1:2], w_ref[...])
    h_ref[0] = h.astype(h_ref.dtype)
    part = jnp.concatenate([jnp.sum(h, axis=1, keepdims=True),
                            jnp.sum(h * h, axis=1, keepdims=True)], axis=1)

    @pl.when(t == 0)
    def _():
        st_ref[...] = jnp.zeros_like(st_ref)

    st_ref[0] += part


def _bn_relu_conv_stats_kernel(h_ref, he_ref, st1_ref, g_ref, b_ref, w_ref,
                               y_ref, st2_ref, *, count):
    # BN1(scale/shift folded in-kernel from stats) + ReLU + conv2 + BN2 partials.
    t = pl.program_id(1)
    last = pl.num_programs(1) - 1
    sc, sh = _scale_shift_from_stats(st1_ref[...], count, g_ref[...], b_ref[...])
    a = jnp.maximum(h_ref[0].astype(jnp.float32) * sc + sh, 0.0)
    # Halo columns of h get the same BN+ReLU; zero pad at the sequence ends.
    ea = jnp.maximum(he_ref[0, 0].astype(jnp.float32) * sc + sh, 0.0)
    al = jnp.where(t == 0, 0.0, ea[:, 0:1])
    ar = jnp.where(t == last, 0.0, ea[:, 1:2])
    y = _conv3_dot(a, al, ar, w_ref[...])
    y_ref[0] = y.astype(y_ref.dtype)
    part = jnp.concatenate([jnp.sum(y, axis=1, keepdims=True),
                            jnp.sum(y * y, axis=1, keepdims=True)], axis=1)

    @pl.when(t == 0)
    def _():
        st2_ref[...] = jnp.zeros_like(st2_ref)

    st2_ref[0] += part


def _bn_relu_kernel(y_ref, st_ref, g_ref, b_ref, o_ref, *, count):
    sc, sh = _scale_shift_from_stats(st_ref[...], count, g_ref[...], b_ref[...])
    o_ref[0] = jnp.maximum(y_ref[0].astype(jnp.float32) * sc + sh,
                           0.0).astype(o_ref.dtype)


def _edge_pairs(t, lt):
    """Per-L-tile neighbour columns: (N, n_t, C, 2) with [...,0]=left halo,
    [...,1]=right halo; zeros at the sequence boundaries.  Tiny strided slices
    (N*C*n_t elements) -- negligible next to the tensors themselves."""
    N, C, L = t.shape
    n_t = L // lt
    z = jnp.zeros((N, C, 1), t.dtype)
    left = jnp.concatenate([z, t[:, :, lt - 1::lt][:, :, :n_t - 1]], axis=2)
    right = jnp.concatenate([t[:, :, 0::lt][:, :, 1:], z], axis=2)
    e = jnp.stack([left, right], axis=-1)            # (N, C, n_t, 2)
    return jnp.transpose(e, (0, 2, 1, 3))            # (N, n_t, C, 2)


def _vmem_cap_bytes():
    try:
        return int(pltpu.get_tpu_info().vmem_capacity_bytes)
    except Exception:
        return 64 * 1024 * 1024                      # conservative (v7x per-TC)


def _choose_lt(L, c_in, c_mid, c_out, interm_bytes, cap):
    """Largest multiple-of-128 L tile that divides L and fits the per-chip
    VMEM budget (double-buffered DMA blocks + f32 temporaries)."""
    per_lane = (2 * (c_in * 4 + c_mid * interm_bytes)
                + 2 * (c_mid * interm_bytes + c_out * interm_bytes)
                + 6 * max(c_in, c_mid, c_out) * 4)
    budget = min(int(cap * 0.4), 48 * 1024 * 1024)
    target = max(128, (budget // max(per_lane, 1)) // 128 * 128)
    if L <= target or L % 128 != 0:
        return L                                     # full row per step
    for cand in range(target, 127, -128):
        if L % cand == 0:
            return cand
    return L


def _double_conv_tiled(x, w1r, g1, b1, w2r, g2, b2, Cmid, Cout,
                       interm_dtype, lt):
    N, Cin, L = x.shape
    cap = _vmem_cap_bytes()
    if lt is None:
        lt = _choose_lt(L, Cin, Cmid, Cout, jnp.dtype(interm_dtype).itemsize, cap)
    if L % lt != 0:
        raise ValueError(f"L={L} must be divisible by the L tile {lt}")
    n_t = L // lt
    count = float(N * L)
    cparams = pltpu.CompilerParams(
        dimension_semantics=("parallel", "arbitrary"),
        vmem_limit_bytes=min(int(cap * 7 // 10), 96 * 1024 * 1024))

    # -------- pass 1: conv1 (MXU) + BN1 (sum, sumsq) accumulated over L tiles --
    x_edges = _edge_pairs(x, lt)
    h, st1 = pl.pallas_call(
        _conv_stats_kernel,
        grid=(N, n_t),
        in_specs=[
            pl.BlockSpec((1, Cin, lt), lambda n, t: (n, 0, t)),
            pl.BlockSpec((1, 1, Cin, 2), lambda n, t: (n, t, 0, 0)),
            pl.BlockSpec((Cmid, 3 * Cin), lambda n, t: (0, 0)),
        ],
        out_specs=(
            pl.BlockSpec((1, Cmid, lt), lambda n, t: (n, 0, t)),
            pl.BlockSpec((1, Cmid, 2), lambda n, t: (n, 0, 0)),
        ),
        out_shape=(
            jax.ShapeDtypeStruct((N, Cmid, L), interm_dtype),
            jax.ShapeDtypeStruct((N, Cmid, 2), jnp.float32),
        ),
        compiler_params=cparams,
    )(x, x_edges, w1r)

    # -------- pass 2: BN1+ReLU (scale/shift in-kernel) + conv2 + BN2 partials --
    h_edges = _edge_pairs(h, lt)
    y, st2 = pl.pallas_call(
        functools.partial(_bn_relu_conv_stats_kernel, count=count),
        grid=(N, n_t),
        in_specs=[
            pl.BlockSpec((1, Cmid, lt), lambda n, t: (n, 0, t)),
            pl.BlockSpec((1, 1, Cmid, 2), lambda n, t: (n, t, 0, 0)),
            pl.BlockSpec((N, Cmid, 2), lambda n, t: (0, 0, 0)),
            pl.BlockSpec((Cmid, 1), lambda n, t: (0, 0)),
            pl.BlockSpec((Cmid, 1), lambda n, t: (0, 0)),
            pl.BlockSpec((Cout, 3 * Cmid), lambda n, t: (0, 0)),
        ],
        out_specs=(
            pl.BlockSpec((1, Cout, lt), lambda n, t: (n, 0, t)),
            pl.BlockSpec((1, Cout, 2), lambda n, t: (n, 0, 0)),
        ),
        out_shape=(
            jax.ShapeDtypeStruct((N, Cout, L), interm_dtype),
            jax.ShapeDtypeStruct((N, Cout, 2), jnp.float32),
        ),
        compiler_params=cparams,
    )(h, h_edges, st1, g1, b1, w2r)

    # -------- pass 3: BN2 + ReLU, lane-dense NCL output --------
    out = pl.pallas_call(
        functools.partial(_bn_relu_kernel, count=count),
        grid=(N, n_t),
        in_specs=[
            pl.BlockSpec((1, Cout, lt), lambda n, t: (n, 0, t)),
            pl.BlockSpec((N, Cout, 2), lambda n, t: (0, 0, 0)),
            pl.BlockSpec((Cout, 1), lambda n, t: (0, 0)),
            pl.BlockSpec((Cout, 1), lambda n, t: (0, 0)),
        ],
        out_specs=pl.BlockSpec((1, Cout, lt), lambda n, t: (n, 0, t)),
        out_shape=jax.ShapeDtypeStruct((N, Cout, L), x.dtype),
        compiler_params=cparams,
    )(y, st2, g2, b2)
    return out


# ----------------------------------------------------------------------------
# Public wrapper
# ----------------------------------------------------------------------------
def double_conv(x, w1, g1, b1, w2, g2, b2, *, interm_dtype=jnp.bfloat16,
                lt=None, force_tiled=False):
    """x: (N, Cin, L); w1: (Cmid, Cin, 3); w2: (Cout, Cmid, 3); g*/b*: (C,)."""
    N, Cin, L = x.shape
    Cmid = w1.shape[0]
    Cout = w2.shape[0]

    # Weight re-layout only: (C_out, C_in, 3) -> (C_out, 3*C_in), col = k*C_in+ci.
    w1r = jnp.transpose(w1, (0, 2, 1)).reshape(Cmid, 3 * Cin).astype(jnp.float32)
    w2r = jnp.transpose(w2, (0, 2, 1)).reshape(Cout, 3 * Cmid).astype(jnp.float32)
    g1c = g1.reshape(Cmid, 1).astype(jnp.float32)
    b1c = b1.reshape(Cmid, 1).astype(jnp.float32)
    g2c = g2.reshape(Cout, 1).astype(jnp.float32)
    b2c = b2.reshape(Cout, 1).astype(jnp.float32)

    total_act_bytes = (Cin + Cmid + Cout) * N * L * 4
    small = (not force_tiled) and N <= 16 and total_act_bytes <= 2 * 1024 * 1024
    if small:
        return _double_conv_fused(x, w1r, g1c, b1c, w2r, g2c, b2c, Cout)
    return _double_conv_tiled(x, w1r, g1c, b1c, w2r, g2c, b2c, Cmid, Cout,
                              interm_dtype, lt)


# ----------------------------------------------------------------------------
# Pure-JAX reference (PyTorch forward semantics)
# ----------------------------------------------------------------------------
def reference(x, w1, g1, b1, w2, g2, b2, interm_dtype=None):
    def conv(t, w):
        return jax.lax.conv_general_dilated(
            t.astype(jnp.float32), w.astype(jnp.float32), window_strides=(1,),
            padding=((1, 1),), dimension_numbers=("NCH", "OIH", "NCH"))

    def bn_relu(t, g, b):
        mean = jnp.mean(t, axis=(0, 2), keepdims=True)
        var = jnp.mean((t - mean) ** 2, axis=(0, 2), keepdims=True)
        u = t if interm_dtype is None else t.astype(interm_dtype).astype(jnp.float32)
        u = (u - mean) * jax.lax.rsqrt(var + EPS)
        u = u * g.reshape(1, -1, 1) + b.reshape(1, -1, 1)
        return jnp.maximum(u, 0.0)

    h = bn_relu(conv(x, w1), g1, b1)
    y = bn_relu(conv(h, w2), g2, b2)
    return y.astype(x.dtype)


if __name__ == "__main__":
    key = jax.random.PRNGKey(0)
    kx, kw1, kw2, kx2 = jax.random.split(key, 4)

    # Shapes consistent with DoubleConv(in_channels=4, out_channels=8).
    N, Cin, L = 2, 4, 16
    Cmid = Cout = 8  # mid_channels defaults to out_channels

    x = jax.random.normal(kx, (N, Cin, L), jnp.float32)
    w1 = jax.random.normal(kw1, (Cmid, Cin, 3), jnp.float32) * 0.3
    w2 = jax.random.normal(kw2, (Cout, Cmid, 3), jnp.float32) * 0.3
    g1 = jnp.ones((Cmid,), jnp.float32)
    b1 = jnp.zeros((Cmid,), jnp.float32)
    g2 = jnp.ones((Cout,), jnp.float32)
    b2 = jnp.zeros((Cout,), jnp.float32)

    # 1) Fused single-kernel fast path (the shipped small config).
    out = jax.block_until_ready(double_conv(x, w1, g1, b1, w2, g2, b2))
    ref = jax.block_until_ready(reference(x, w1, g1, b1, w2, g2, b2))
    assert out.shape == (N, Cout, L), out.shape
    assert jnp.allclose(out, ref, atol=1e-4, rtol=1e-4), \
        float(jnp.max(jnp.abs(out - ref)))

    # 2) General L-tiled 3-pass path (f32 intermediates, tight tolerance).
    L2 = 512
    x2 = jax.random.normal(kx2, (N, Cin, L2), jnp.float32)
    out2 = jax.block_until_ready(
        double_conv(x2, w1, g1, b1, w2, g2, b2,
                    interm_dtype=jnp.float32, lt=128, force_tiled=True))
    ref2 = jax.block_until_ready(reference(x2, w1, g1, b1, w2, g2, b2))
    assert jnp.allclose(out2, ref2, atol=2e-3, rtol=2e-3), \
        float(jnp.max(jnp.abs(out2 - ref2)))

    # 3) Default bf16 inter-pass intermediates (bandwidth mode), looser tolerance.
    out3 = jax.block_until_ready(
        double_conv(x2, w1, g1, b1, w2, g2, b2, lt=128, force_tiled=True))
    ref3 = jax.block_until_ready(
        reference(x2, w1, g1, b1, w2, g2, b2, interm_dtype=jnp.bfloat16))
    assert jnp.allclose(out3, ref3, atol=5e-2, rtol=5e-2), \
        float(jnp.max(jnp.abs(out3 - ref3)))

    print("KERNEL_OK")
</pallas_src>

<mosaic_0001>
module attributes {stable_mosaic.version = 11 : i64} {
  func.func @_fused_small_kernel(%arg0: i32, %arg1: memref<2x4x16xf32, #tpu.memory_space<vmem>>, %arg2: memref<8x12xf32, #tpu.memory_space<vmem>>, %arg3: memref<8x1xf32, #tpu.memory_space<vmem>>, %arg4: memref<8x1xf32, #tpu.memory_space<vmem>>, %arg5: memref<8x24xf32, #tpu.memory_space<vmem>>, %arg6: memref<8x1xf32, #tpu.memory_space<vmem>>, %arg7: memref<8x1xf32, #tpu.memory_space<vmem>>, %arg8: memref<2x8x16xf32, #tpu.memory_space<vmem>>) attributes {dimension_semantics = [#tpu.dimension_semantics<arbitrary>], iteration_bounds = array<i64: 1>, scalar_prefetch = 0 : i64, scratch_operands = 0 : i64, tpu.core_type = #tpu.core_type<tc>, window_params = [{pipeline_mode = #tpu.pipeline_mode<synchronous>, transform_indices = @transform_0, window_bounds = array<i64: 2, 4, 16>}, {pipeline_mode = #tpu.pipeline_mode<synchronous>, transform_indices = @transform_1, window_bounds = array<i64: 8, 12>}, {pipeline_mode = #tpu.pipeline_mode<synchronous>, transform_indices = @transform_2, window_bounds = array<i64: 8, 1>}, {pipeline_mode = #tpu.pipeline_mode<synchronous>, transform_indices = @transform_3, window_bounds = array<i64: 8, 1>}, {pipeline_mode = #tpu.pipeline_mode<synchronous>, transform_indices = @transform_4, window_bounds = array<i64: 8, 24>}, {pipeline_mode = #tpu.pipeline_mode<synchronous>, transform_indices = @transform_5, window_bounds = array<i64: 8, 1>}, {pipeline_mode = #tpu.pipeline_mode<synchronous>, transform_indices = @transform_6, window_bounds = array<i64: 8, 1>}, {pipeline_mode = #tpu.pipeline_mode<synchronous>, transform_indices = @transform_7, window_bounds = array<i64: 2, 8, 16>}]} {
    %c0 = arith.constant 0 : index
    %c0_0 = arith.constant 0 : index
    %0 = vector.load %arg2[%c0, %c0_0] : memref<8x12xf32, #tpu.memory_space<vmem>>, vector<8x12xf32>
    %c0_1 = arith.constant 0 : index
    %c0_2 = arith.constant 0 : index
    %1 = vector.load %arg5[%c0_1, %c0_2] : memref<8x24xf32, #tpu.memory_space<vmem>>, vector<8x24xf32>
    %cst = arith.constant 0.000000e+00 : f32
    %2 = vector.broadcast %cst : f32 to vector<4x1xf32>
    %cst_3 = arith.constant 0.000000e+00 : f32
    %3 = vector.broadcast %cst_3 : f32 to vector<8x1xf32>
    %cst_4 = arith.constant 0.000000e+00 : f32
    %4 = vector.broadcast %cst_4 : f32 to vector<8x1xf32>
    %cst_5 = arith.constant 0.000000e+00 : f32
    %5 = vector.broadcast %cst_5 : f32 to vector<8x1xf32>
    %c0_6 = arith.constant 0 : index
    %c0_7 = arith.constant 0 : index
    %c0_8 = arith.constant 0 : index
    %6 = vector.load %arg1[%c0_6, %c0_7, %c0_8] : memref<2x4x16xf32, #tpu.memory_space<vmem>>, vector<1x4x16xf32>
    %7 = vector.shape_cast %6 : vector<1x4x16xf32> to vector<4x16xf32>
    %8 = tpu.iota {dimensions = array<i32: 1>} : vector<1x16xi32>
    %c0_i32 = arith.constant 0 : i32
    %9 = vector.broadcast %c0_i32 : i32 to vector<1x16xi32>
    %10 = arith.cmpi eq, %8, %9 : vector<1x16xi32>
    %c1_i32 = arith.constant 1 : i32
    %11 = tpu.dynamic_rotate %7 by %c1_i32 dim 1 : vector<4x16xf32>, i32 -> vector<4x16xf32>
    %12 = vector.shape_cast %10 : vector<1x16xi1> to vector<1x16xi1>
    %13 = vector.broadcast %12 : vector<1x16xi1> to vector<4x16xi1>
    %14 = vector.shape_cast %2 : vector<4x1xf32> to vector<4x1xf32>
    %15 = vector.broadcast %14 : vector<4x1xf32> to vector<4x16xf32>
    %16 = arith.select %13, %15, %11 : vector<4x16xi1>, vector<4x16xf32>
    %c15_i32 = arith.constant 15 : i32
    %17 = vector.broadcast %c15_i32 : i32 to vector<1x16xi32>
    %18 = arith.cmpi eq, %8, %17 : vector<1x16xi32>
    %c15_i32_9 = arith.constant 15 : i32
    %19 = tpu.dynamic_rotate %7 by %c15_i32_9 dim 1 : vector<4x16xf32>, i32 -> vector<4x16xf32>
    %20 = vector.shape_cast %18 : vector<1x16xi1> to vector<1x16xi1>
    %21 = vector.broadcast %20 : vector<1x16xi1> to vector<4x16xi1>
    %22 = vector.shape_cast %2 : vector<4x1xf32> to vector<4x1xf32>
    %23 = vector.broadcast %22 : vector<4x1xf32> to vector<4x16xf32>
    %24 = arith.select %21, %23, %19 : vector<4x16xi1>, vector<4x16xf32>
    %25 = vector.extract_strided_slice %0 {offsets = [0, 0], sizes = [8, 1], strides = [1, 1]} : vector<8x12xf32> to vector<8x1xf32>
    %26 = vector.extract_strided_slice %16 {offsets = [0, 0], sizes = [1, 16], strides = [1, 1]} : vector<4x16xf32> to vector<1x16xf32>
    %27 = vector.broadcast %25 : vector<8x1xf32> to vector<8x16xf32>
    %28 = vector.broadcast %26 : vector<1x16xf32> to vector<8x16xf32>
    %29 = arith.mulf %27, %28 : vector<8x16xf32>
    %30 = vector.extract_strided_slice %0 {offsets = [0, 1], sizes = [8, 1], strides = [1, 1]} : vector<8x12xf32> to vector<8x1xf32>
    %31 = vector.extract_strided_slice %16 {offsets = [1, 0], sizes = [1, 16], strides = [1, 1]} : vector<4x16xf32> to vector<1x16xf32>
    %32 = vector.broadcast %30 : vector<8x1xf32> to vector<8x16xf32>
    %33 = vector.broadcast %31 : vector<1x16xf32> to vector<8x16xf32>
    %34 = arith.mulf %32, %33 : vector<8x16xf32>
    %35 = arith.addf %29, %34 : vector<8x16xf32>
    %36 = vector.extract_strided_slice %0 {offsets = [0, 2], sizes = [8, 1], strides = [1, 1]} : vector<8x12xf32> to vector<8x1xf32>
    %37 = vector.extract_strided_slice %16 {offsets = [2, 0], sizes = [1, 16], strides = [1, 1]} : vector<4x16xf32> to vector<1x16xf32>
    %38 = vector.broadcast %36 : vector<8x1xf32> to vector<8x16xf32>
    %39 = vector.broadcast %37 : vector<1x16xf32> to vector<8x16xf32>
    %40 = arith.mulf %38, %39 : vector<8x16xf32>
    %41 = arith.addf %35, %40 : vector<8x16xf32>
    %42 = vector.extract_strided_slice %0 {offsets = [0, 3], sizes = [8, 1], strides = [1, 1]} : vector<8x12xf32> to vector<8x1xf32>
    %43 = vector.extract_strided_slice %16 {offsets = [3, 0], sizes = [1, 16], strides = [1, 1]} : vector<4x16xf32> to vector<1x16xf32>
    %44 = vector.broadcast %42 : vector<8x1xf32> to vector<8x16xf32>
    %45 = vector.broadcast %43 : vector<1x16xf32> to vector<8x16xf32>
    %46 = arith.mulf %44, %45 : vector<8x16xf32>
    %47 = arith.addf %41, %46 : vector<8x16xf32>
    %48 = vector.extract_strided_slice %0 {offsets = [0, 4], sizes = [8, 1], strides = [1, 1]} : vector<8x12xf32> to vector<8x1xf32>
    %49 = vector.extract_strided_slice %7 {offsets = [0, 0], sizes = [1, 16], strides = [1, 1]} : vector<4x16xf32> to vector<1x16xf32>
    %50 = vector.broadcast %48 : vector<8x1xf32> to vector<8x16xf32>
    %51 = vector.broadcast %49 : vector<1x16xf32> to vector<8x16xf32>
    %52 = arith.mulf %50, %51 : vector<8x16xf32>
    %53 = arith.addf %47, %52 : vector<8x16xf32>
    %54 = vector.extract_strided_slice %0 {offsets = [0, 5], sizes = [8, 1], strides = [1, 1]} : vector<8x12xf32> to vector<8x1xf32>
    %55 = vector.extract_strided_slice %7 {offsets = [1, 0], sizes = [1, 16], strides = [1, 1]} : vector<4x16xf32> to vector<1x16xf32>
    %56 = vector.broadcast %54 : vector<8x1xf32> to vector<8x16xf32>
    %57 = vector.broadcast %55 : vector<1x16xf32> to vector<8x16xf32>
    %58 = arith.mulf %56, %57 : vector<8x16xf32>
    %59 = arith.addf %53, %58 : vector<8x16xf32>
    %60 = vector.extract_strided_slice %0 {offsets = [0, 6], sizes = [8, 1], strides = [1, 1]} : vector<8x12xf32> to vector<8x1xf32>
    %61 = vector.extract_strided_slice %7 {offsets = [2, 0], sizes = [1, 16], strides = [1, 1]} : vector<4x16xf32> to vector<1x16xf32>
    %62 = vector.broadcast %60 : vector<8x1xf32> to vector<8x16xf32>
    %63 = vector.broadcast %61 : vector<1x16xf32> to vector<8x16xf32>
    %64 = arith.mulf %62, %63 : vector<8x16xf32>
    %65 = arith.addf %59, %64 : vector<8x16xf32>
    %66 = vector.extract_strided_slice %0 {offsets = [0, 7], sizes = [8, 1], strides = [1, 1]} : vector<8x12xf32> to vector<8x1xf32>
    %67 = vector.extract_strided_slice %7 {offsets = [3, 0], sizes = [1, 16], strides = [1, 1]} : vector<4x16xf32> to vector<1x16xf32>
    %68 = vector.broadcast %66 : vector<8x1xf32> to vector<8x16xf32>
    %69 = vector.broadcast %67 : vector<1x16xf32> to vector<8x16xf32>
    %70 = arith.mulf %68, %69 : vector<8x16xf32>
    %71 = arith.addf %65, %70 : vector<8x16xf32>
    %72 = vector.extract_strided_slice %0 {offsets = [0, 8], sizes = [8, 1], strides = [1, 1]} : vector<8x12xf32> to vector<8x1xf32>
    %73 = vector.extract_strided_slice %24 {offsets = [0, 0], sizes = [1, 16], strides = [1, 1]} : vector<4x16xf32> to vector<1x16xf32>
    %74 = vector.broadcast %72 : vector<8x1xf32> to vector<8x16xf32>
    %75 = vector.broadcast %73 : vector<1x16xf32> to vector<8x16xf32>
    %76 = arith.mulf %74, %75 : vector<8x16xf32>
    %77 = arith.addf %71, %76 : vector<8x16xf32>
    %78 = vector.extract_strided_slice %0 {offsets = [0, 9], sizes = [8, 1], strides = [1, 1]} : vector<8x12xf32> to vector<8x1xf32>
    %79 = vector.extract_strided_slice %24 {offsets = [1, 0], sizes = [1, 16], strides = [1, 1]} : vector<4x16xf32> to vector<1x16xf32>
    %80 = vector.broadcast %78 : vector<8x1xf32> to vector<8x16xf32>
    %81 = vector.broadcast %79 : vector<1x16xf32> to vector<8x16xf32>
    %82 = arith.mulf %80, %81 : vector<8x16xf32>
    %83 = arith.addf %77, %82 : vector<8x16xf32>
    %84 = vector.extract_strided_slice %0 {offsets = [0, 10], sizes = [8, 1], strides = [1, 1]} : vector<8x12xf32> to vector<8x1xf32>
    %85 = vector.extract_strided_slice %24 {offsets = [2, 0], sizes = [1, 16], strides = [1, 1]} : vector<4x16xf32> to vector<1x16xf32>
    %86 = vector.broadcast %84 : vector<8x1xf32> to vector<8x16xf32>
    %87 = vector.broadcast %85 : vector<1x16xf32> to vector<8x16xf32>
    %88 = arith.mulf %86, %87 : vector<8x16xf32>
    %89 = arith.addf %83, %88 : vector<8x16xf32>
    %90 = vector.extract_strided_slice %0 {offsets = [0, 11], sizes = [8, 1], strides = [1, 1]} : vector<8x12xf32> to vector<8x1xf32>
    %91 = vector.extract_strided_slice %24 {offsets = [3, 0], sizes = [1, 16], strides = [1, 1]} : vector<4x16xf32> to vector<1x16xf32>
    %92 = vector.broadcast %90 : vector<8x1xf32> to vector<8x16xf32>
    %93 = vector.broadcast %91 : vector<1x16xf32> to vector<8x16xf32>
    %94 = arith.mulf %92, %93 : vector<8x16xf32>
    %95 = arith.addf %89, %94 : vector<8x16xf32>
    %cst_10 = arith.constant dense<0.000000e+00> : vector<8xf32>
    %96 = vector.multi_reduction <add>, %95, %cst_10 [1] : vector<8x16xf32> to vector<8xf32>
    %97 = vector.shape_cast %96 : vector<8xf32> to vector<8x1xf32>
    %98 = arith.addf %4, %97 : vector<8x1xf32>
    %99 = arith.mulf %95, %95 : vector<8x16xf32>
    %cst_11 = arith.constant dense<0.000000e+00> : vector<8xf32>
    %100 = vector.multi_reduction <add>, %99, %cst_11 [1] : vector<8x16xf32> to vector<8xf32>
    %101 = vector.shape_cast %100 : vector<8xf32> to vector<8x1xf32>
    %102 = arith.addf %5, %101 : vector<8x1xf32>
    %c1 = arith.constant 1 : index
    %c0_12 = arith.constant 0 : index
    %c0_13 = arith.constant 0 : index
    %103 = vector.load %arg1[%c1, %c0_12, %c0_13] : memref<2x4x16xf32, #tpu.memory_space<vmem>>, vector<1x4x16xf32>
    %104 = vector.shape_cast %103 : vector<1x4x16xf32> to vector<4x16xf32>
    %105 = tpu.iota {dimensions = array<i32: 1>} : vector<1x16xi32>
    %c0_i32_14 = arith.constant 0 : i32
    %106 = vector.broadcast %c0_i32_14 : i32 to vector<1x16xi32>
    %107 = arith.cmpi eq, %105, %106 : vector<1x16xi32>
    %c1_i32_15 = arith.constant 1 : i32
    %108 = tpu.dynamic_rotate %104 by %c1_i32_15 dim 1 : vector<4x16xf32>, i32 -> vector<4x16xf32>
    %109 = vector.shape_cast %107 : vector<1x16xi1> to vector<1x16xi1>
    %110 = vector.broadcast %109 : vector<1x16xi1> to vector<4x16xi1>
    %111 = vector.shape_cast %2 : vector<4x1xf32> to vector<4x1xf32>
    %112 = vector.broadcast %111 : vector<4x1xf32> to vector<4x16xf32>
    %113 = arith.select %110, %112, %108 : vector<4x16xi1>, vector<4x16xf32>
    %c15_i32_16 = arith.constant 15 : i32
    %114 = vector.broadcast %c15_i32_16 : i32 to vector<1x16xi32>
    %115 = arith.cmpi eq, %105, %114 : vector<1x16xi32>
    %c15_i32_17 = arith.constant 15 : i32
    %116 = tpu.dynamic_rotate %104 by %c15_i32_17 dim 1 : vector<4x16xf32>, i32 -> vector<4x16xf32>
    %117 = vector.shape_cast %115 : vector<1x16xi1> to vector<1x16xi1>
    %118 = vector.broadcast %117 : vector<1x16xi1> to vector<4x16xi1>
    %119 = vector.shape_cast %2 : vector<4x1xf32> to vector<4x1xf32>
    %120 = vector.broadcast %119 : vector<4x1xf32> to vector<4x16xf32>
    %121 = arith.select %118, %120, %116 : vector<4x16xi1>, vector<4x16xf32>
    %122 = vector.extract_strided_slice %0 {offsets = [0, 0], sizes = [8, 1], strides = [1, 1]} : vector<8x12xf32> to vector<8x1xf32>
    %123 = vector.extract_strided_slice %113 {offsets = [0, 0], sizes = [1, 16], strides = [1, 1]} : vector<4x16xf32> to vector<1x16xf32>
    %124 = vector.broadcast %122 : vector<8x1xf32> to vector<8x16xf32>
    %125 = vector.broadcast %123 : vector<1x16xf32> to vector<8x16xf32>
    %126 = arith.mulf %124, %125 : vector<8x16xf32>
    %127 = vector.extract_strided_slice %0 {offsets = [0, 1], sizes = [8, 1], strides = [1, 1]} : vector<8x12xf32> to vector<8x1xf32>
    %128 = vector.extract_strided_slice %113 {offsets = [1, 0], sizes = [1, 16], strides = [1, 1]} : vector<4x16xf32> to vector<1x16xf32>
    %129 = vector.broadcast %127 : vector<8x1xf32> to vector<8x16xf32>
    %130 = vector.broadcast %128 : vector<1x16xf32> to vector<8x16xf32>
    %131 = arith.mulf %129, %130 : vector<8x16xf32>
    %132 = arith.addf %126, %131 : vector<8x16xf32>
    %133 = vector.extract_strided_slice %0 {offsets = [0, 2], sizes = [8, 1], strides = [1, 1]} : vector<8x12xf32> to vector<8x1xf32>
    %134 = vector.extract_strided_slice %113 {offsets = [2, 0], sizes = [1, 16], strides = [1, 1]} : vector<4x16xf32> to vector<1x16xf32>
    %135 = vector.broadcast %133 : vector<8x1xf32> to vector<8x16xf32>
    %136 = vector.broadcast %134 : vector<1x16xf32> to vector<8x16xf32>
    %137 = arith.mulf %135, %136 : vector<8x16xf32>
    %138 = arith.addf %132, %137 : vector<8x16xf32>
    %139 = vector.extract_strided_slice %0 {offsets = [0, 3], sizes = [8, 1], strides = [1, 1]} : vector<8x12xf32> to vector<8x1xf32>
    %140 = vector.extract_strided_slice %113 {offsets = [3, 0], sizes = [1, 16], strides = [1, 1]} : vector<4x16xf32> to vector<1x16xf32>
    %141 = vector.broadcast %139 : vector<8x1xf32> to vector<8x16xf32>
    %142 = vector.broadcast %140 : vector<1x16xf32> to vector<8x16xf32>
    %143 = arith.mulf %141, %142 : vector<8x16xf32>
    %144 = arith.addf %138, %143 : vector<8x16xf32>
    %145 = vector.extract_strided_slice %0 {offsets = [0, 4], sizes = [8, 1], strides = [1, 1]} : vector<8x12xf32> to vector<8x1xf32>
    %146 = vector.extract_strided_slice %104 {offsets = [0, 0], sizes = [1, 16], strides = [1, 1]} : vector<4x16xf32> to vector<1x16xf32>
    %147 = vector.broadcast %145 : vector<8x1xf32> to vector<8x16xf32>
    %148 = vector.broadcast %146 : vector<1x16xf32> to vector<8x16xf32>
    %149 = arith.mulf %147, %148 : vector<8x16xf32>
    %150 = arith.addf %144, %149 : vector<8x16xf32>
    %151 = vector.extract_strided_slice %0 {offsets = [0, 5], sizes = [8, 1], strides = [1, 1]} : vector<8x12xf32> to vector<8x1xf32>
    %152 = vector.extract_strided_slice %104 {offsets = [1, 0], sizes = [1, 16], strides = [1, 1]} : vector<4x16xf32> to vector<1x16xf32>
    %153 = vector.broadcast %151 : vector<8x1xf32> to vector<8x16xf32>
    %154 = vector.broadcast %152 : vector<1x16xf32> to vector<8x16xf32>
    %155 = arith.mulf %153, %154 : vector<8x16xf32>
    %156 = arith.addf %150, %155 : vector<8x16xf32>
    %157 = vector.extract_strided_slice %0 {offsets = [0, 6], sizes = [8, 1], strides = [1, 1]} : vector<8x12xf32> to vector<8x1xf32>
    %158 = vector.extract_strided_slice %104 {offsets = [2, 0], sizes = [1, 16], strides = [1, 1]} : vector<4x16xf32> to vector<1x16xf32>
    %159 = vector.broadcast %157 : vector<8x1xf32> to vector<8x16xf32>
    %160 = vector.broadcast %158 : vector<1x16xf32> to vector<8x16xf32>
    %161 = arith.mulf %159, %160 : vector<8x16xf32>
    %162 = arith.addf %156, %161 : vector<8x16xf32>
    %163 = vector.extract_strided_slice %0 {offsets = [0, 7], sizes = [8, 1], strides = [1, 1]} : vector<8x12xf32> to vector<8x1xf32>
    %164 = vector.extract_strided_slice %104 {offsets = [3, 0], sizes = [1, 16], strides = [1, 1]} : vector<4x16xf32> to vector<1x16xf32>
    %165 = vector.broadcast %163 : vector<8x1xf32> to vector<8x16xf32>
    %166 = vector.broadcast %164 : vector<1x16xf32> to vector<8x16xf32>
    %167 = arith.mulf %165, %166 : vector<8x16xf32>
    %168 = arith.addf %162, %167 : vector<8x16xf32>
    %169 = vector.extract_strided_slice %0 {offsets = [0, 8], sizes = [8, 1], strides = [1, 1]} : vector<8x12xf32> to vector<8x1xf32>
    %170 = vector.extract_strided_slice %121 {offsets = [0, 0], sizes = [1, 16], strides = [1, 1]} : vector<4x16xf32> to vector<1x16xf32>
    %171 = vector.broadcast %169 : vector<8x1xf32> to vector<8x16xf32>
    %172 = vector.broadcast %170 : vector<1x16xf32> to vector<8x16xf32>
    %173 = arith.mulf %171, %172 : vector<8x16xf32>
    %174 = arith.addf %168, %173 : vector<8x16xf32>
    %175 = vector.extract_strided_slice %0 {offsets = [0, 9], sizes = [8, 1], strides = [1, 1]} : vector<8x12xf32> to vector<8x1xf32>
    %176 = vector.extract_strided_slice %121 {offsets = [1, 0], sizes = [1, 16], strides = [1, 1]} : vector<4x16xf32> to vector<1x16xf32>
    %177 = vector.broadcast %175 : vector<8x1xf32> to vector<8x16xf32>
    %178 = vector.broadcast %176 : vector<1x16xf32> to vector<8x16xf32>
    %179 = arith.mulf %177, %178 : vector<8x16xf32>
    %180 = arith.addf %174, %179 : vector<8x16xf32>
    %181 = vector.extract_strided_slice %0 {offsets = [0, 10], sizes = [8, 1], strides = [1, 1]} : vector<8x12xf32> to vector<8x1xf32>
    %182 = vector.extract_strided_slice %121 {offsets = [2, 0], sizes = [1, 16], strides = [1, 1]} : vector<4x16xf32> to vector<1x16xf32>
    %183 = vector.broadcast %181 : vector<8x1xf32> to vector<8x16xf32>
    %184 = vector.broadcast %182 : vector<1x16xf32> to vector<8x16xf32>
    %185 = arith.mulf %183, %184 : vector<8x16xf32>
    %186 = arith.addf %180, %185 : vector<8x16xf32>
    %187 = vector.extract_strided_slice %0 {offsets = [0, 11], sizes = [8, 1], strides = [1, 1]} : vector<8x12xf32> to vector<8x1xf32>
    %188 = vector.extract_strided_slice %121 {offsets = [3, 0], sizes = [1, 16], strides = [1, 1]} : vector<4x16xf32> to vector<1x16xf32>
    %189 = vector.broadcast %187 : vector<8x1xf32> to vector<8x16xf32>
    %190 = vector.broadcast %188 : vector<1x16xf32> to vector<8x16xf32>
    %191 = arith.mulf %189, %190 : vector<8x16xf32>
    %192 = arith.addf %186, %191 : vector<8x16xf32>
    %cst_18 = arith.constant dense<0.000000e+00> : vector<8xf32>
    %193 = vector.multi_reduction <add>, %192, %cst_18 [1] : vector<8x16xf32> to vector<8xf32>
    %194 = vector.shape_cast %193 : vector<8xf32> to vector<8x1xf32>
    %195 = arith.addf %98, %194 : vector<8x1xf32>
    %196 = arith.mulf %192, %192 : vector<8x16xf32>
    %cst_19 = arith.constant dense<0.000000e+00> : vector<8xf32>
    %197 = vector.multi_reduction <add>, %196, %cst_19 [1] : vector<8x16xf32> to vector<8xf32>
    %198 = vector.shape_cast %197 : vector<8xf32> to vector<8x1xf32>
    %199 = arith.addf %102, %198 : vector<8x1xf32>
    %c0_20 = arith.constant 0 : index
    %c0_21 = arith.constant 0 : index
    %200 = vector.load %arg3[%c0_20, %c0_21] : memref<8x1xf32, #tpu.memory_space<vmem>>, vector<8x1xf32>
    %c0_22 = arith.constant 0 : index
    %c0_23 = arith.constant 0 : index
    %201 = vector.load %arg4[%c0_22, %c0_23] : memref<8x1xf32, #tpu.memory_space<vmem>>, vector<8x1xf32>
    %cst_24 = arith.constant 3.200000e+01 : f32
    %202 = vector.broadcast %cst_24 : f32 to vector<8x1xf32>
    %203 = arith.divf %195, %202 : vector<8x1xf32>
    %cst_25 = arith.constant 3.200000e+01 : f32
    %204 = vector.broadcast %cst_25 : f32 to vector<8x1xf32>
    %205 = arith.divf %199, %204 : vector<8x1xf32>
    %206 = arith.mulf %203, %203 : vector<8x1xf32>
    %207 = arith.subf %205, %206 : vector<8x1xf32>
    %cst_26 = arith.constant 0.000000e+00 : f32
    %208 = vector.broadcast %cst_26 : f32 to vector<8x1xf32>
    %209 = arith.maximumf %207, %208 : vector<8x1xf32>
    %cst_27 = arith.constant 9.99999974E-6 : f32
    %210 = vector.broadcast %cst_27 : f32 to vector<8x1xf32>
    %211 = arith.addf %209, %210 : vector<8x1xf32>
    %212 = math.rsqrt %211 : vector<8x1xf32>
    %213 = arith.mulf %200, %212 : vector<8x1xf32>
    %214 = arith.mulf %203, %213 : vector<8x1xf32>
    %215 = arith.subf %201, %214 : vector<8x1xf32>
    %cst_28 = arith.constant 0.000000e+00 : f32
    %216 = vector.broadcast %cst_28 : f32 to vector<8x1xf32>
    %cst_29 = arith.constant 0.000000e+00 : f32
    %217 = vector.broadcast %cst_29 : f32 to vector<8x1xf32>
    %218 = vector.broadcast %213 : vector<8x1xf32> to vector<8x16xf32>
    %219 = arith.mulf %95, %218 : vector<8x16xf32>
    %220 = vector.broadcast %215 : vector<8x1xf32> to vector<8x16xf32>
    %221 = arith.addf %219, %220 : vector<8x16xf32>
    %cst_30 = arith.constant 0.000000e+00 : f32
    %222 = vector.broadcast %cst_30 : f32 to vector<8x16xf32>
    %223 = arith.maximumf %221, %222 : vector<8x16xf32>
    %224 = tpu.iota {dimensions = array<i32: 1>} : vector<1x16xi32>
    %c0_i32_31 = arith.constant 0 : i32
    %225 = vector.broadcast %c0_i32_31 : i32 to vector<1x16xi32>
    %226 = arith.cmpi eq, %224, %225 : vector<1x16xi32>
    %c1_i32_32 = arith.constant 1 : i32
    %227 = tpu.dynamic_rotate %223 by %c1_i32_32 dim 1 : vector<8x16xf32>, i32 -> vector<8x16xf32>
    %228 = vector.shape_cast %226 : vector<1x16xi1> to vector<1x16xi1>
    %229 = vector.broadcast %228 : vector<1x16xi1> to vector<8x16xi1>
    %230 = vector.shape_cast %3 : vector<8x1xf32> to vector<8x1xf32>
    %231 = vector.broadcast %230 : vector<8x1xf32> to vector<8x16xf32>
    %232 = arith.select %229, %231, %227 : vector<8x16xi1>, vector<8x16xf32>
    %c15_i32_33 = arith.constant 15 : i32
    %233 = vector.broadcast %c15_i32_33 : i32 to vector<1x16xi32>
    %234 = arith.cmpi eq, %224, %233 : vector<1x16xi32>
    %c15_i32_34 = arith.constant 15 : i32
    %235 = tpu.dynamic_rotate %223 by %c15_i32_34 dim 1 : vector<8x16xf32>, i32 -> vector<8x16xf32>
    %236 = vector.shape_cast %234 : vector<1x16xi1> to vector<1x16xi1>
    %237 = vector.broadcast %236 : vector<1x16xi1> to vector<8x16xi1>
    %238 = vector.shape_cast %3 : vector<8x1xf32> to vector<8x1xf32>
    %239 = vector.broadcast %238 : vector<8x1xf32> to vector<8x16xf32>
    %240 = arith.select %237, %239, %235 : vector<8x16xi1>, vector<8x16xf32>
    %241 = vector.extract_strided_slice %1 {offsets = [0, 0], sizes = [8, 1], strides = [1, 1]} : vector<8x24xf32> to vector<8x1xf32>
    %242 = vector.extract_strided_slice %232 {offsets = [0, 0], sizes = [1, 16], strides = [1, 1]} : vector<8x16xf32> to vector<1x16xf32>
    %243 = vector.broadcast %241 : vector<8x1xf32> to vector<8x16xf32>
    %244 = vector.broadcast %242 : vector<1x16xf32> to vector<8x16xf32>
    %245 = arith.mulf %243, %244 : vector<8x16xf32>
    %246 = vector.extract_strided_slice %1 {offsets = [0, 1], sizes = [8, 1], strides = [1, 1]} : vector<8x24xf32> to vector<8x1xf32>
    %247 = vector.extract_strided_slice %232 {offsets = [1, 0], sizes = [1, 16], strides = [1, 1]} : vector<8x16xf32> to vector<1x16xf32>
    %248 = vector.broadcast %246 : vector<8x1xf32> to vector<8x16xf32>
    %249 = vector.broadcast %247 : vector<1x16xf32> to vector<8x16xf32>
    %250 = arith.mulf %248, %249 : vector<8x16xf32>
    %251 = arith.addf %245, %250 : vector<8x16xf32>
    %252 = vector.extract_strided_slice %1 {offsets = [0, 2], sizes = [8, 1], strides = [1, 1]} : vector<8x24xf32> to vector<8x1xf32>
    %253 = vector.extract_strided_slice %232 {offsets = [2, 0], sizes = [1, 16], strides = [1, 1]} : vector<8x16xf32> to vector<1x16xf32>
    %254 = vector.broadcast %252 : vector<8x1xf32> to vector<8x16xf32>
    %255 = vector.broadcast %253 : vector<1x16xf32> to vector<8x16xf32>
    %256 = arith.mulf %254, %255 : vector<8x16xf32>
    %257 = arith.addf %251, %256 : vector<8x16xf32>
    %258 = vector.extract_strided_slice %1 {offsets = [0, 3], sizes = [8, 1], strides = [1, 1]} : vector<8x24xf32> to vector<8x1xf32>
    %259 = vector.extract_strided_slice %232 {offsets = [3, 0], sizes = [1, 16], strides = [1, 1]} : vector<8x16xf32> to vector<1x16xf32>
    %260 = vector.broadcast %258 : vector<8x1xf32> to vector<8x16xf32>
    %261 = vector.broadcast %259 : vector<1x16xf32> to vector<8x16xf32>
    %262 = arith.mulf %260, %261 : vector<8x16xf32>
    %263 = arith.addf %257, %262 : vector<8x16xf32>
    %264 = vector.extract_strided_slice %1 {offsets = [0, 4], sizes = [8, 1], strides = [1, 1]} : vector<8x24xf32> to vector<8x1xf32>
    %265 = vector.extract_strided_slice %232 {offsets = [4, 0], sizes = [1, 16], strides = [1, 1]} : vector<8x16xf32> to vector<1x16xf32>
    %266 = vector.broadcast %264 : vector<8x1xf32> to vector<8x16xf32>
    %267 = vector.broadcast %265 : vector<1x16xf32> to vector<8x16xf32>
    %268 = arith.mulf %266, %267 : vector<8x16xf32>
    %269 = arith.addf %263, %268 : vector<8x16xf32>
    %270 = vector.extract_strided_slice %1 {offsets = [0, 5], sizes = [8, 1], strides = [1, 1]} : vector<8x24xf32> to vector<8x1xf32>
    %271 = vector.extract_strided_slice %232 {offsets = [5, 0], sizes = [1, 16], strides = [1, 1]} : vector<8x16xf32> to vector<1x16xf32>
    %272 = vector.broadcast %270 : vector<8x1xf32> to vector<8x16xf32>
    %273 = vector.broadcast %271 : vector<1x16xf32> to vector<8x16xf32>
    %274 = arith.mulf %272, %273 : vector<8x16xf32>
    %275 = arith.addf %269, %274 : vector<8x16xf32>
    %276 = vector.extract_strided_slice %1 {offsets = [0, 6], sizes = [8, 1], strides = [1, 1]} : vector<8x24xf32> to vector<8x1xf32>
    %277 = vector.extract_strided_slice %232 {offsets = [6, 0], sizes = [1, 16], strides = [1, 1]} : vector<8x16xf32> to vector<1x16xf32>
    %278 = vector.broadcast %276 : vector<8x1xf32> to vector<8x16xf32>
    %279 = vector.broadcast %277 : vector<1x16xf32> to vector<8x16xf32>
    %280 = arith.mulf %278, %279 : vector<8x16xf32>
    %281 = arith.addf %275, %280 : vector<8x16xf32>
    %282 = vector.extract_strided_slice %1 {offsets = [0, 7], sizes = [8, 1], strides = [1, 1]} : vector<8x24xf32> to vector<8x1xf32>
    %283 = vector.extract_strided_slice %232 {offsets = [7, 0], sizes = [1, 16], strides = [1, 1]} : vector<8x16xf32> to vector<1x16xf32>
    %284 = vector.broadcast %282 : vector<8x1xf32> to vector<8x16xf32>
    %285 = vector.broadcast %283 : vector<1x16xf32> to vector<8x16xf32>
    %286 = arith.mulf %284, %285 : vector<8x16xf32>
    %287 = arith.addf %281, %286 : vector<8x16xf32>
    %288 = vector.extract_strided_slice %1 {offsets = [0, 8], sizes = [8, 1], strides = [1, 1]} : vector<8x24xf32> to vector<8x1xf32>
    %289 = vector.extract_strided_slice %223 {offsets = [0, 0], sizes = [1, 16], strides = [1, 1]} : vector<8x16xf32> to vector<1x16xf32>
    %290 = vector.broadcast %288 : vector<8x1xf32> to vector<8x16xf32>
    %291 = vector.broadcast %289 : vector<1x16xf32> to vector<8x16xf32>
    %292 = arith.mulf %290, %291 : vector<8x16xf32>
    %293 = arith.addf %287, %292 : vector<8x16xf32>
    %294 = vector.extract_strided_slice %1 {offsets = [0, 9], sizes = [8, 1], strides = [1, 1]} : vector<8x24xf32> to vector<8x1xf32>
    %295 = vector.extract_strided_slice %223 {offsets = [1, 0], sizes = [1, 16], strides = [1, 1]} : vector<8x16xf32> to vector<1x16xf32>
    %296 = vector.broadcast %294 : vector<8x1xf32> to vector<8x16xf32>
    %297 = vector.broadcast %295 : vector<1x16xf32> to vector<8x16xf32>
    %298 = arith.mulf %296, %297 : vector<8x16xf32>
    %299 = arith.addf %293, %298 : vector<8x16xf32>
    %300 = vector.extract_strided_slice %1 {offsets = [0, 10], sizes = [8, 1], strides = [1, 1]} : vector<8x24xf32> to vector<8x1xf32>
    %301 = vector.extract_strided_slice %223 {offsets = [2, 0], sizes = [1, 16], strides = [1, 1]} : vector<8x16xf32> to vector<1x16xf32>
    %302 = vector.broadcast %300 : vector<8x1xf32> to vector<8x16xf32>
    %303 = vector.broadcast %301 : vector<1x16xf32> to vector<8x16xf32>
    %304 = arith.mulf %302, %303 : vector<8x16xf32>
    %305 = arith.addf %299, %304 : vector<8x16xf32>
    %306 = vector.extract_strided_slice %1 {offsets = [0, 11], sizes = [8, 1], strides = [1, 1]} : vector<8x24xf32> to vector<8x1xf32>
    %307 = vector.extract_strided_slice %223 {offsets = [3, 0], sizes = [1, 16], strides = [1, 1]} : vector<8x16xf32> to vector<1x16xf32>
    %308 = vector.broadcast %306 : vector<8x1xf32> to vector<8x16xf32>
    %309 = vector.broadcast %307 : vector<1x16xf32> to vector<8x16xf32>
    %310 = arith.mulf %308, %309 : vector<8x16xf32>
    %311 = arith.addf %305, %310 : vector<8x16xf32>
    %312 = vector.extract_strided_slice %1 {offsets = [0, 12], sizes = [8, 1], strides = [1, 1]} : vector<8x24xf32> to vector<8x1xf32>
    %313 = vector.extract_strided_slice %223 {offsets = [4, 0], sizes = [1, 16], strides = [1, 1]} : vector<8x16xf32> to vector<1x16xf32>
    %314 = vector.broadcast %312 : vector<8x1xf32> to vector<8x16xf32>
    %315 = vector.broadcast %313 : vector<1x16xf32> to vector<8x16xf32>
    %316 = arith.mulf %314, %315 : vector<8x16xf32>
    %317 = arith.addf %311, %316 : vector<8x16xf32>
    %318 = vector.extract_strided_slice %1 {offsets = [0, 13], sizes = [8, 1], strides = [1, 1]} : vector<8x24xf32> to vector<8x1xf32>
    %319 = vector.extract_strided_slice %223 {offsets = [5, 0], sizes = [1, 16], strides = [1, 1]} : vector<8x16xf32> to vector<1x16xf32>
    %320 = vector.broadcast %318 : vector<8x1xf32> to vector<8x16xf32>
    %321 = vector.broadcast %319 : vector<1x16xf32> to vector<8x16xf32>
    %322 = arith.mulf %320, %321 : vector<8x16xf32>
    %323 = arith.addf %317, %322 : vector<8x16xf32>
    %324 = vector.extract_strided_slice %1 {offsets = [0, 14], sizes = [8, 1], strides = [1, 1]} : vector<8x24xf32> to vector<8x1xf32>
    %325 = vector.extract_strided_slice %223 {offsets = [6, 0], sizes = [1, 16], strides = [1, 1]} : vector<8x16xf32> to vector<1x16xf32>
    %326 = vector.broadcast %324 : vector<8x1xf32> to vector<8x16xf32>
    %327 = vector.broadcast %325 : vector<1x16xf32> to vector<8x16xf32>
    %328 = arith.mulf %326, %327 : vector<8x16xf32>
    %329 = arith.addf %323, %328 : vector<8x16xf32>
    %330 = vector.extract_strided_slice %1 {offsets = [0, 15], sizes = [8, 1], strides = [1, 1]} : vector<8x24xf32> to vector<8x1xf32>
    %331 = vector.extract_strided_slice %223 {offsets = [7, 0], sizes = [1, 16], strides = [1, 1]} : vector<8x16xf32> to vector<1x16xf32>
    %332 = vector.broadcast %330 : vector<8x1xf32> to vector<8x16xf32>
    %333 = vector.broadcast %331 : vector<1x16xf32> to vector<8x16xf32>
    %334 = arith.mulf %332, %333 : vector<8x16xf32>
    %335 = arith.addf %329, %334 : vector<8x16xf32>
    %336 = vector.extract_strided_slice %1 {offsets = [0, 16], sizes = [8, 1], strides = [1, 1]} : vector<8x24xf32> to vector<8x1xf32>
    %337 = vector.extract_strided_slice %240 {offsets = [0, 0], sizes = [1, 16], strides = [1, 1]} : vector<8x16xf32> to vector<1x16xf32>
    %338 = vector.broadcast %336 : vector<8x1xf32> to vector<8x16xf32>
    %339 = vector.broadcast %337 : vector<1x16xf32> to vector<8x16xf32>
    %340 = arith.mulf %338, %339 : vector<8x16xf32>
    %341 = arith.addf %335, %340 : vector<8x16xf32>
    %342 = vector.extract_strided_slice %1 {offsets = [0, 17], sizes = [8, 1], strides = [1, 1]} : vector<8x24xf32> to vector<8x1xf32>
    %343 = vector.extract_strided_slice %240 {offsets = [1, 0], sizes = [1, 16], strides = [1, 1]} : vector<8x16xf32> to vector<1x16xf32>
    %344 = vector.broadcast %342 : vector<8x1xf32> to vector<8x16xf32>
    %345 = vector.broadcast %343 : vector<1x16xf32> to vector<8x16xf32>
    %346 = arith.mulf %344, %345 : vector<8x16xf32>
    %347 = arith.addf %341, %346 : vector<8x16xf32>
    %348 = vector.extract_strided_slice %1 {offsets = [0, 18], sizes = [8, 1], strides = [1, 1]} : vector<8x24xf32> to vector<8x1xf32>
    %349 = vector.extract_strided_slice %240 {offsets = [2, 0], sizes = [1, 16], strides = [1, 1]} : vector<8x16xf32> to vector<1x16xf32>
    %350 = vector.broadcast %348 : vector<8x1xf32> to vector<8x16xf32>
    %351 = vector.broadcast %349 : vector<1x16xf32> to vector<8x16xf32>
    %352 = arith.mulf %350, %351 : vector<8x16xf32>
    %353 = arith.addf %347, %352 : vector<8x16xf32>
    %354 = vector.extract_strided_slice %1 {offsets = [0, 19], sizes = [8, 1], strides = [1, 1]} : vector<8x24xf32> to vector<8x1xf32>
    %355 = vector.extract_strided_slice %240 {offsets = [3, 0], sizes = [1, 16], strides = [1, 1]} : vector<8x16xf32> to vector<1x16xf32>
    %356 = vector.broadcast %354 : vector<8x1xf32> to vector<8x16xf32>
    %357 = vector.broadcast %355 : vector<1x16xf32> to vector<8x16xf32>
    %358 = arith.mulf %356, %357 : vector<8x16xf32>
    %359 = arith.addf %353, %358 : vector<8x16xf32>
    %360 = vector.extract_strided_slice %1 {offsets = [0, 20], sizes = [8, 1], strides = [1, 1]} : vector<8x24xf32> to vector<8x1xf32>
    %361 = vector.extract_strided_slice %240 {offsets = [4, 0], sizes = [1, 16], strides = [1, 1]} : vector<8x16xf32> to vector<1x16xf32>
    %362 = vector.broadcast %360 : vector<8x1xf32> to vector<8x16xf32>
    %363 = vector.broadcast %361 : vector<1x16xf32> to vector<8x16xf32>
    %364 = arith.mulf %362, %363 : vector<8x16xf32>
    %365 = arith.addf %359, %364 : vector<8x16xf32>
    %366 = vector.extract_strided_slice %1 {offsets = [0, 21], sizes = [8, 1], strides = [1, 1]} : vector<8x24xf32> to vector<8x1xf32>
    %367 = vector.extract_strided_slice %240 {offsets = [5, 0], sizes = [1, 16], strides = [1, 1]} : vector<8x16xf32> to vector<1x16xf32>
    %368 = vector.broadcast %366 : vector<8x1xf32> to vector<8x16xf32>
    %369 = vector.broadcast %367 : vector<1x16xf32> to vector<8x16xf32>
    %370 = arith.mulf %368, %369 : vector<8x16xf32>
    %371 = arith.addf %365, %370 : vector<8x16xf32>
    %372 = vector.extract_strided_slice %1 {offsets = [0, 22], sizes = [8, 1], strides = [1, 1]} : vector<8x24xf32> to vector<8x1xf32>
    %373 = vector.extract_strided_slice %240 {offsets = [6, 0], sizes = [1, 16], strides = [1, 1]} : vector<8x16xf32> to vector<1x16xf32>
    %374 = vector.broadcast %372 : vector<8x1xf32> to vector<8x16xf32>
    %375 = vector.broadcast %373 : vector<1x16xf32> to vector<8x16xf32>
    %376 = arith.mulf %374, %375 : vector<8x16xf32>
    %377 = arith.addf %371, %376 : vector<8x16xf32>
    %378 = vector.extract_strided_slice %1 {offsets = [0, 23], sizes = [8, 1], strides = [1, 1]} : vector<8x24xf32> to vector<8x1xf32>
    %379 = vector.extract_strided_slice %240 {offsets = [7, 0], sizes = [1, 16], strides = [1, 1]} : vector<8x16xf32> to vector<1x16xf32>
    %380 = vector.broadcast %378 : vector<8x1xf32> to vector<8x16xf32>
    %381 = vector.broadcast %379 : vector<1x16xf32> to vector<8x16xf32>
    %382 = arith.mulf %380, %381 : vector<8x16xf32>
    %383 = arith.addf %377, %382 : vector<8x16xf32>
    %cst_35 = arith.constant dense<0.000000e+00> : vector<8xf32>
    %384 = vector.multi_reduction <add>, %383, %cst_35 [1] : vector<8x16xf32> to vector<8xf32>
    %385 = vector.shape_cast %384 : vector<8xf32> to vector<8x1xf32>
    %386 = arith.addf %216, %385 : vector<8x1xf32>
    %387 = arith.mulf %383, %383 : vector<8x16xf32>
    %cst_36 = arith.constant dense<0.000000e+00> : vector<8xf32>
    %388 = vector.multi_reduction <add>, %387, %cst_36 [1] : vector<8x16xf32> to vector<8xf32>
    %389 = vector.shape_cast %388 : vector<8xf32> to vector<8x1xf32>
    %390 = arith.addf %217, %389 : vector<8x1xf32>
    %391 = vector.broadcast %213 : vector<8x1xf32> to vector<8x16xf32>
    %392 = arith.mulf %192, %391 : vector<8x16xf32>
    %393 = vector.broadcast %215 : vector<8x1xf32> to vector<8x16xf32>
    %394 = arith.addf %392, %393 : vector<8x16xf32>
    %cst_37 = arith.constant 0.000000e+00 : f32
    %395 = vector.broadcast %cst_37 : f32 to vector<8x16xf32>
    %396 = arith.maximumf %394, %395 : vector<8x16xf32>
    %397 = tpu.iota {dimensions = array<i32: 1>} : vector<1x16xi32>
    %c0_i32_38 = arith.constant 0 : i32
    %398 = vector.broadcast %c0_i32_38 : i32 to vector<1x16xi32>
    %399 = arith.cmpi eq, %397, %398 : vector<1x16xi32>
    %c1_i32_39 = arith.constant 1 : i32
    %400 = tpu.dynamic_rotate %396 by %c1_i32_39 dim 1 : vector<8x16xf32>, i32 -> vector<8x16xf32>
    %401 = vector.shape_cast %399 : vector<1x16xi1> to vector<1x16xi1>
    %402 = vector.broadcast %401 : vector<1x16xi1> to vector<8x16xi1>
    %403 = vector.shape_cast %3 : vector<8x1xf32> to vector<8x1xf32>
    %404 = vector.broadcast %403 : vector<8x1xf32> to vector<8x16xf32>
    %405 = arith.select %402, %404, %400 : vector<8x16xi1>, vector<8x16xf32>
    %c15_i32_40 = arith.constant 15 : i32
    %406 = vector.broadcast %c15_i32_40 : i32 to vector<1x16xi32>
    %407 = arith.cmpi eq, %397, %406 : vector<1x16xi32>
    %c15_i32_41 = arith.constant 15 : i32
    %408 = tpu.dynamic_rotate %396 by %c15_i32_41 dim 1 : vector<8x16xf32>, i32 -> vector<8x16xf32>
    %409 = vector.shape_cast %407 : vector<1x16xi1> to vector<1x16xi1>
    %410 = vector.broadcast %409 : vector<1x16xi1> to vector<8x16xi1>
    %411 = vector.shape_cast %3 : vector<8x1xf32> to vector<8x1xf32>
    %412 = vector.broadcast %411 : vector<8x1xf32> to vector<8x16xf32>
    %413 = arith.select %410, %412, %408 : vector<8x16xi1>, vector<8x16xf32>
    %414 = vector.extract_strided_slice %1 {offsets = [0, 0], sizes = [8, 1], strides = [1, 1]} : vector<8x24xf32> to vector<8x1xf32>
    %415 = vector.extract_strided_slice %405 {offsets = [0, 0], sizes = [1, 16], strides = [1, 1]} : vector<8x16xf32> to vector<1x16xf32>
    %416 = vector.broadcast %414 : vector<8x1xf32> to vector<8x16xf32>
    %417 = vector.broadcast %415 : vector<1x16xf32> to vector<8x16xf32>
    %418 = arith.mulf %416, %417 : vector<8x16xf32>
    %419 = vector.extract_strided_slice %1 {offsets = [0, 1], sizes = [8, 1], strides = [1, 1]} : vector<8x24xf32> to vector<8x1xf32>
    %420 = vector.extract_strided_slice %405 {offsets = [1, 0], sizes = [1, 16], strides = [1, 1]} : vector<8x16xf32> to vector<1x16xf32>
    %421 = vector.broadcast %419 : vector<8x1xf32> to vector<8x16xf32>
    %422 = vector.broadcast %420 : vector<1x16xf32> to vector<8x16xf32>
    %423 = arith.mulf %421, %422 : vector<8x16xf32>
    %424 = arith.addf %418, %423 : vector<8x16xf32>
    %425 = vector.extract_strided_slice %1 {offsets = [0, 2], sizes = [8, 1], strides = [1, 1]} : vector<8x24xf32> to vector<8x1xf32>
    %426 = vector.extract_strided_slice %405 {offsets = [2, 0], sizes = [1, 16], strides = [1, 1]} : vector<8x16xf32> to vector<1x16xf32>
    %427 = vector.broadcast %425 : vector<8x1xf32> to vector<8x16xf32>
    %428 = vector.broadcast %426 : vector<1x16xf32> to vector<8x16xf32>
    %429 = arith.mulf %427, %428 : vector<8x16xf32>
    %430 = arith.addf %424, %429 : vector<8x16xf32>
    %431 = vector.extract_strided_slice %1 {offsets = [0, 3], sizes = [8, 1], strides = [1, 1]} : vector<8x24xf32> to vector<8x1xf32>
    %432 = vector.extract_strided_slice %405 {offsets = [3, 0], sizes = [1, 16], strides = [1, 1]} : vector<8x16xf32> to vector<1x16xf32>
    %433 = vector.broadcast %431 : vector<8x1xf32> to vector<8x16xf32>
    %434 = vector.broadcast %432 : vector<1x16xf32> to vector<8x16xf32>
    %435 = arith.mulf %433, %434 : vector<8x16xf32>
    %436 = arith.addf %430, %435 : vector<8x16xf32>
    %437 = vector.extract_strided_slice %1 {offsets = [0, 4], sizes = [8, 1], strides = [1, 1]} : vector<8x24xf32> to vector<8x1xf32>
    %438 = vector.extract_strided_slice %405 {offsets = [4, 0], sizes = [1, 16], strides = [1, 1]} : vector<8x16xf32> to vector<1x16xf32>
    %439 = vector.broadcast %437 : vector<8x1xf32> to vector<8x16xf32>
    %440 = vector.broadcast %438 : vector<1x16xf32> to vector<8x16xf32>
    %441 = arith.mulf %439, %440 : vector<8x16xf32>
    %442 = arith.addf %436, %441 : vector<8x16xf32>
    %443 = vector.extract_strided_slice %1 {offsets = [0, 5], sizes = [8, 1], strides = [1, 1]} : vector<8x24xf32> to vector<8x1xf32>
    %444 = vector.extract_strided_slice %405 {offsets = [5, 0], sizes = [1, 16], strides = [1, 1]} : vector<8x16xf32> to vector<1x16xf32>
    %445 = vector.broadcast %443 : vector<8x1xf32> to vector<8x16xf32>
    %446 = vector.broadcast %444 : vector<1x16xf32> to vector<8x16xf32>
    %447 = arith.mulf %445, %446 : vector<8x16xf32>
    %448 = arith.addf %442, %447 : vector<8x16xf32>
    %449 = vector.extract_strided_slice %1 {offsets = [0, 6], sizes = [8, 1], strides = [1, 1]} : vector<8x24xf32> to vector<8x1xf32>
    %450 = vector.extract_strided_slice %405 {offsets = [6, 0], sizes = [1, 16], strides = [1, 1]} : vector<8x16xf32> to vector<1x16xf32>
    %451 = vector.broadcast %449 : vector<8x1xf32> to vector<8x16xf32>
    %452 = vector.broadcast %450 : vector<1x16xf32> to vector<8x16xf32>
    %453 = arith.mulf %451, %452 : vector<8x16xf32>
    %454 = arith.addf %448, %453 : vector<8x16xf32>
    %455 = vector.extract_strided_slice %1 {offsets = [0, 7], sizes = [8, 1], strides = [1, 1]} : vector<8x24xf32> to vector<8x1xf32>
    %456 = vector.extract_strided_slice %405 {offsets = [7, 0], sizes = [1, 16], strides = [1, 1]} : vector<8x16xf32> to vector<1x16xf32>
    %457 = vector.broadcast %455 : vector<8x1xf32> to vector<8x16xf32>
    %458 = vector.broadcast %456 : vector<1x16xf32> to vector<8x16xf32>
    %459 = arith.mulf %457, %458 : vector<8x16xf32>
    %460 = arith.addf %454, %459 : vector<8x16xf32>
    %461 = vector.extract_strided_slice %1 {offsets = [0, 8], sizes = [8, 1], strides = [1, 1]} : vector<8x24xf32> to vector<8x1xf32>
    %462 = vector.extract_strided_slice %396 {offsets = [0, 0], sizes = [1, 16], strides = [1, 1]} : vector<8x16xf32> to vector<1x16xf32>
    %463 = vector.broadcast %461 : vector<8x1xf32> to vector<8x16xf32>
    %464 = vector.broadcast %462 : vector<1x16xf32> to vector<8x16xf32>
    %465 = arith.mulf %463, %464 : vector<8x16xf32>
    %466 = arith.addf %460, %465 : vector<8x16xf32>
    %467 = vector.extract_strided_slice %1 {offsets = [0, 9], sizes = [8, 1], strides = [1, 1]} : vector<8x24xf32> to vector<8x1xf32>
    %468 = vector.extract_strided_slice %396 {offsets = [1, 0], sizes = [1, 16], strides = [1, 1]} : vector<8x16xf32> to vector<1x16xf32>
    %469 = vector.broadcast %467 : vector<8x1xf32> to vector<8x16xf32>
    %470 = vector.broadcast %468 : vector<1x16xf32> to vector<8x16xf32>
    %471 = arith.mulf %469, %470 : vector<8x16xf32>
    %472 = arith.addf %466, %471 : vector<8x16xf32>
    %473 = vector.extract_strided_slice %1 {offsets = [0, 10], sizes = [8, 1], strides = [1, 1]} : vector<8x24xf32> to vector<8x1xf32>
    %474 = vector.extract_strided_slice %396 {offsets = [2, 0], sizes = [1, 16], strides = [1, 1]} : vector<8x16xf32> to vector<1x16xf32>
    %475 = vector.broadcast %473 : vector<8x1xf32> to vector<8x16xf32>
    %476 = vector.broadcast %474 : vector<1x16xf32> to vector<8x16xf32>
    %477 = arith.mulf %475, %476 : vector<8x16xf32>
    %478 = arith.addf %472, %477 : vector<8x16xf32>
    %479 = vector.extract_strided_slice %1 {offsets = [0, 11], sizes = [8, 1], strides = [1, 1]} : vector<8x24xf32> to vector<8x1xf32>
    %480 = vector.extract_strided_slice %396 {offsets = [3, 0], sizes = [1, 16], strides = [1, 1]} : vector<8x16xf32> to vector<1x16xf32>
    %481 = vector.broadcast %479 : vector<8x1xf32> to vector<8x16xf32>
    %482 = vector.broadcast %480 : vector<1x16xf32> to vector<8x16xf32>
    %483 = arith.mulf %481, %482 : vector<8x16xf32>
    %484 = arith.addf %478, %483 : vector<8x16xf32>
    %485 = vector.extract_strided_slice %1 {offsets = [0, 12], sizes = [8, 1], strides = [1, 1]} : vector<8x24xf32> to vector<8x1xf32>
    %486 = vector.extract_strided_slice %396 {offsets = [4, 0], sizes = [1, 16], strides = [1, 1]} : vector<8x16xf32> to vector<1x16xf32>
    %487 = vector.broadcast %485 : vector<8x1xf32> to vector<8x16xf32>
    %488 = vector.broadcast %486 : vector<1x16xf32> to vector<8x16xf32>
    %489 = arith.mulf %487, %488 : vector<8x16xf32>
    %490 = arith.addf %484, %489 : vector<8x16xf32>
    %491 = vector.extract_strided_slice %1 {offsets = [0, 13], sizes = [8, 1], strides = [1, 1]} : vector<8x24xf32> to vector<8x1xf32>
    %492 = vector.extract_strided_slice %396 {offsets = [5, 0], sizes = [1, 16], strides = [1, 1]} : vector<8x16xf32> to vector<1x16xf32>
    %493 = vector.broadcast %491 : vector<8x1xf32> to vector<8x16xf32>
    %494 = vector.broadcast %492 : vector<1x16xf32> to vector<8x16xf32>
    %495 = arith.mulf %493, %494 : vector<8x16xf32>
    %496 = arith.addf %490, %495 : vector<8x16xf32>
    %497 = vector.extract_strided_slice %1 {offsets = [0, 14], sizes = [8, 1], strides = [1, 1]} : vector<8x24xf32> to vector<8x1xf32>
    %498 = vector.extract_strided_slice %396 {offsets = [6, 0], sizes = [1, 16], strides = [1, 1]} : vector<8x16xf32> to vector<1x16xf32>
    %499 = vector.broadcast %497 : vector<8x1xf32> to vector<8x16xf32>
    %500 = vector.broadcast %498 : vector<1x16xf32> to vector<8x16xf32>
    %501 = arith.mulf %499, %500 : vector<8x16xf32>
    %502 = arith.addf %496, %501 : vector<8x16xf32>
    %503 = vector.extract_strided_slice %1 {offsets = [0, 15], sizes = [8, 1], strides = [1, 1]} : vector<8x24xf32> to vector<8x1xf32>
    %504 = vector.extract_strided_slice %396 {offsets = [7, 0], sizes = [1, 16], strides = [1, 1]} : vector<8x16xf32> to vector<1x16xf32>
    %505 = vector.broadcast %503 : vector<8x1xf32> to vector<8x16xf32>
    %506 = vector.broadcast %504 : vector<1x16xf32> to vector<8x16xf32>
    %507 = arith.mulf %505, %506 : vector<8x16xf32>
    %508 = arith.addf %502, %507 : vector<8x16xf32>
    %509 = vector.extract_strided_slice %1 {offsets = [0, 16], sizes = [8, 1], strides = [1, 1]} : vector<8x24xf32> to vector<8x1xf32>
    %510 = vector.extract_strided_slice %413 {offsets = [0, 0], sizes = [1, 16], strides = [1, 1]} : vector<8x16xf32> to vector<1x16xf32>
    %511 = vector.broadcast %509 : vector<8x1xf32> to vector<8x16xf32>
    %512 = vector.broadcast %510 : vector<1x16xf32> to vector<8x16xf32>
    %513 = arith.mulf %511, %512 : vector<8x16xf32>
    %514 = arith.addf %508, %513 : vector<8x16xf32>
    %515 = vector.extract_strided_slice %1 {offsets = [0, 17], sizes = [8, 1], strides = [1, 1]} : vector<8x24xf32> to vector<8x1xf32>
    %516 = vector.extract_strided_slice %413 {offsets = [1, 0], sizes = [1, 16], strides = [1, 1]} : vector<8x16xf32> to vector<1x16xf32>
    %517 = vector.broadcast %515 : vector<8x1xf32> to vector<8x16xf32>
    %518 = vector.broadcast %516 : vector<1x16xf32> to vector<8x16xf32>
    %519 = arith.mulf %517, %518 : vector<8x16xf32>
    %520 = arith.addf %514, %519 : vector<8x16xf32>
    %521 = vector.extract_strided_slice %1 {offsets = [0, 18], sizes = [8, 1], strides = [1, 1]} : vector<8x24xf32> to vector<8x1xf32>
    %522 = vector.extract_strided_slice %413 {offsets = [2, 0], sizes = [1, 16], strides = [1, 1]} : vector<8x16xf32> to vector<1x16xf32>
    %523 = vector.broadcast %521 : vector<8x1xf32> to vector<8x16xf32>
    %524 = vector.broadcast %522 : vector<1x16xf32> to vector<8x16xf32>
    %525 = arith.mulf %523, %524 : vector<8x16xf32>
    %526 = arith.addf %520, %525 : vector<8x16xf32>
    %527 = vector.extract_strided_slice %1 {offsets = [0, 19], sizes = [8, 1], strides = [1, 1]} : vector<8x24xf32> to vector<8x1xf32>
    %528 = vector.extract_strided_slice %413 {offsets = [3, 0], sizes = [1, 16], strides = [1, 1]} : vector<8x16xf32> to vector<1x16xf32>
    %529 = vector.broadcast %527 : vector<8x1xf32> to vector<8x16xf32>
    %530 = vector.broadcast %528 : vector<1x16xf32> to vector<8x16xf32>
    %531 = arith.mulf %529, %530 : vector<8x16xf32>
    %532 = arith.addf %526, %531 : vector<8x16xf32>
    %533 = vector.extract_strided_slice %1 {offsets = [0, 20], sizes = [8, 1], strides = [1, 1]} : vector<8x24xf32> to vector<8x1xf32>
    %534 = vector.extract_strided_slice %413 {offsets = [4, 0], sizes = [1, 16], strides = [1, 1]} : vector<8x16xf32> to vector<1x16xf32>
    %535 = vector.broadcast %533 : vector<8x1xf32> to vector<8x16xf32>
    %536 = vector.broadcast %534 : vector<1x16xf32> to vector<8x16xf32>
    %537 = arith.mulf %535, %536 : vector<8x16xf32>
    %538 = arith.addf %532, %537 : vector<8x16xf32>
    %539 = vector.extract_strided_slice %1 {offsets = [0, 21], sizes = [8, 1], strides = [1, 1]} : vector<8x24xf32> to vector<8x1xf32>
    %540 = vector.extract_strided_slice %413 {offsets = [5, 0], sizes = [1, 16], strides = [1, 1]} : vector<8x16xf32> to vector<1x16xf32>
    %541 = vector.broadcast %539 : vector<8x1xf32> to vector<8x16xf32>
    %542 = vector.broadcast %540 : vector<1x16xf32> to vector<8x16xf32>
    %543 = arith.mulf %541, %542 : vector<8x16xf32>
    %544 = arith.addf %538, %543 : vector<8x16xf32>
    %545 = vector.extract_strided_slice %1 {offsets = [0, 22], sizes = [8, 1], strides = [1, 1]} : vector<8x24xf32> to vector<8x1xf32>
    %546 = vector.extract_strided_slice %413 {offsets = [6, 0], sizes = [1, 16], strides = [1, 1]} : vector<8x16xf32> to vector<1x16xf32>
    %547 = vector.broadcast %545 : vector<8x1xf32> to vector<8x16xf32>
    %548 = vector.broadcast %546 : vector<1x16xf32> to vector<8x16xf32>
    %549 = arith.mulf %547, %548 : vector<8x16xf32>
    %550 = arith.addf %544, %549 : vector<8x16xf32>
    %551 = vector.extract_strided_slice %1 {offsets = [0, 23], sizes = [8, 1], strides = [1, 1]} : vector<8x24xf32> to vector<8x1xf32>
    %552 = vector.extract_strided_slice %413 {offsets = [7, 0], sizes = [1, 16], strides = [1, 1]} : vector<8x16xf32> to vector<1x16xf32>
    %553 = vector.broadcast %551 : vector<8x1xf32> to vector<8x16xf32>
    %554 = vector.broadcast %552 : vector<1x16xf32> to vector<8x16xf32>
    %555 = arith.mulf %553, %554 : vector<8x16xf32>
    %556 = arith.addf %550, %555 : vector<8x16xf32>
    %cst_42 = arith.constant dense<0.000000e+00> : vector<8xf32>
    %557 = vector.multi_reduction <add>, %556, %cst_42 [1] : vector<8x16xf32> to vector<8xf32>
    %558 = vector.shape_cast %557 : vector<8xf32> to vector<8x1xf32>
    %559 = arith.addf %386, %558 : vector<8x1xf32>
    %560 = arith.mulf %556, %556 : vector<8x16xf32>
    %cst_43 = arith.constant dense<0.000000e+00> : vector<8xf32>
    %561 = vector.multi_reduction <add>, %560, %cst_43 [1] : vector<8x16xf32> to vector<8xf32>
    %562 = vector.shape_cast %561 : vector<8xf32> to vector<8x1xf32>
    %563 = arith.addf %390, %562 : vector<8x1xf32>
    %c0_44 = arith.constant 0 : index
    %c0_45 = arith.constant 0 : index
    %564 = vector.load %arg6[%c0_44, %c0_45] : memref<8x1xf32, #tpu.memory_space<vmem>>, vector<8x1xf32>
    %c0_46 = arith.constant 0 : index
    %c0_47 = arith.constant 0 : index
    %565 = vector.load %arg7[%c0_46, %c0_47] : memref<8x1xf32, #tpu.memory_space<vmem>>, vector<8x1xf32>
    %cst_48 = arith.constant 3.200000e+01 : f32
    %566 = vector.broadcast %cst_48 : f32 to vector<8x1xf32>
    %567 = arith.divf %559, %566 : vector<8x1xf32>
    %cst_49 = arith.constant 3.200000e+01 : f32
    %568 = vector.broadcast %cst_49 : f32 to vector<8x1xf32>
    %569 = arith.divf %563, %568 : vector<8x1xf32>
    %570 = arith.mulf %567, %567 : vector<8x1xf32>
    %571 = arith.subf %569, %570 : vector<8x1xf32>
    %cst_50 = arith.constant 0.000000e+00 : f32
    %572 = vector.broadcast %cst_50 : f32 to vector<8x1xf32>
    %573 = arith.maximumf %571, %572 : vector<8x1xf32>
    %cst_51 = arith.constant 9.99999974E-6 : f32
    %574 = vector.broadcast %cst_51 : f32 to vector<8x1xf32>
    %575 = arith.addf %573, %574 : vector<8x1xf32>
    %576 = math.rsqrt %575 : vector<8x1xf32>
    %577 = arith.mulf %564, %576 : vector<8x1xf32>
    %578 = arith.mulf %567, %577 : vector<8x1xf32>
    %579 = arith.subf %565, %578 : vector<8x1xf32>
    %580 = vector.broadcast %577 : vector<8x1xf32> to vector<8x16xf32>
    %581 = arith.mulf %383, %580 : vector<8x16xf32>
    %582 = vector.broadcast %579 : vector<8x1xf32> to vector<8x16xf32>
    %583 = arith.addf %581, %582 : vector<8x16xf32>
    %cst_52 = arith.constant 0.000000e+00 : f32
    %584 = vector.broadcast %cst_52 : f32 to vector<8x16xf32>
    %585 = arith.maximumf %583, %584 : vector<8x16xf32>
    %c0_53 = arith.constant 0 : index
    %c0_54 = arith.constant 0 : index
    %c0_55 = arith.constant 0 : index
    %586 = vector.load %arg8[%c0_53, %c0_54, %c0_55] : memref<2x8x16xf32, #tpu.memory_space<vmem>>, vector<1x8x16xf32>
    %587 = vector.shape_cast %586 : vector<1x8x16xf32> to vector<8x16xf32>
    %588 = vector.shape_cast %585 : vector<8x16xf32> to vector<1x8x16xf32>
    tpu.vector_store %arg8[%c0_53, %c0_54, %c0_55], %588 {strides = array<i32>} : memref<2x8x16xf32, #tpu.memory_space<vmem>>, vector<1x8x16xf32>,
    %589 = vector.broadcast %577 : vector<8x1xf32> to vector<8x16xf32>
    %590 = arith.mulf %556, %589 : vector<8x16xf32>
    %591 = vector.broadcast %579 : vector<8x1xf32> to vector<8x16xf32>
    %592 = arith.addf %590, %591 : vector<8x16xf32>
    %cst_56 = arith.constant 0.000000e+00 : f32
    %593 = vector.broadcast %cst_56 : f32 to vector<8x16xf32>
    %594 = arith.maximumf %592, %593 : vector<8x16xf32>
    %c1_57 = arith.constant 1 : index
    %c0_58 = arith.constant 0 : index
    %c0_59 = arith.constant 0 : index
    %595 = vector.load %arg8[%c1_57, %c0_58, %c0_59] : memref<2x8x16xf32, #tpu.memory_space<vmem>>, vector<1x8x16xf32>
    %596 = vector.shape_cast %595 : vector<1x8x16xf32> to vector<8x16xf32>
    %597 = vector.shape_cast %594 : vector<8x16xf32> to vector<1x8x16xf32>
    tpu.vector_store %arg8[%c1_57, %c0_58, %c0_59], %597 {strides = array<i32>} : memref<2x8x16xf32, #tpu.memory_space<vmem>>, vector<1x8x16xf32>,
    return
  }
  func.func @transform_0(%arg0: i32) -> (i32, i32, i32) {
    %c0_i32 = arith.constant 0 : i32
    %c0_i32_0 = arith.constant 0 : i32
    %c0_i32_1 = arith.constant 0 : i32
    %c0_i32_2 = arith.constant 0 : i32
    return %c0_i32, %c0_i32_0, %c0_i32_1 : i32, i32, i32
  }
  func.func @transform_1(%arg0: i32) -> (i32, i32) {
    %c0_i32 = arith.constant 0 : i32
    %c0_i32_0 = arith.constant 0 : i32
    %c0_i32_1 = arith.constant 0 : i32
    return %c0_i32, %c0_i32_0 : i32, i32
  }
  func.func @transform_2(%arg0: i32) -> (i32, i32) {
    %c0_i32 = arith.constant 0 : i32
    %c0_i32_0 = arith.constant 0 : i32
    %c0_i32_1 = arith.constant 0 : i32
    return %c0_i32, %c0_i32_0 : i32, i32
  }
  func.func @transform_3(%arg0: i32) -> (i32, i32) {
    %c0_i32 = arith.constant 0 : i32
    %c0_i32_0 = arith.constant 0 : i32
    %c0_i32_1 = arith.constant 0 : i32
    return %c0_i32, %c0_i32_0 : i32, i32
  }
  func.func @transform_4(%arg0: i32) -> (i32, i32) {
    %c0_i32 = arith.constant 0 : i32
    %c0_i32_0 = arith.constant 0 : i32
    %c0_i32_1 = arith.constant 0 : i32
    return %c0_i32, %c0_i32_0 : i32, i32
  }
  func.func @transform_5(%arg0: i32) -> (i32, i32) {
    %c0_i32 = arith.constant 0 : i32
    %c0_i32_0 = arith.constant 0 : i32
    %c0_i32_1 = arith.constant 0 : i32
    return %c0_i32, %c0_i32_0 : i32, i32
  }
  func.func @transform_6(%arg0: i32) -> (i32, i32) {
    %c0_i32 = arith.constant 0 : i32
    %c0_i32_0 = arith.constant 0 : i32
    %c0_i32_1 = arith.constant 0 : i32
    return %c0_i32, %c0_i32_0 : i32, i32
  }
  func.func @transform_7(%arg0: i32) -> (i32, i32, i32) {
    %c0_i32 = arith.constant 0 : i32
    %c0_i32_0 = arith.constant 0 : i32
    %c0_i32_1 = arith.constant 0 : i32
    %c0_i32_2 = arith.constant 0 : i32
    return %c0_i32, %c0_i32_0, %c0_i32_1 : i32, i32, i32
  }
}

</mosaic_0001>

<llo_original>
// kernel: tpu_custom_call.1
$region0: #{tpu_custom_call.1}
  #allocation0 [shape = 'u32[]', space=smem, size = 0x4, offset = 0x4, fixed_abs, tag = 'smem constant byte address 0x4 - core index']
  #allocation1 [shape = 'u32[144,128]{1,0:T(1,128)}', space=vmem, size = 0x12000, scoped, tag = 'internal scratch']
  %s0 = inlined_call_operand.vmem [shape: f32[2,4,16], index: 0, kind: input, shape index: {}]
  %s1 = inlined_call_operand.vmem [shape: f32[8,12], index: 1, kind: input, shape index: {}]
  %s2 = inlined_call_operand.vmem [shape: f32[8,1], index: 2, kind: input, shape index: {}]
  %s3 = inlined_call_operand.vmem [shape: f32[8,1], index: 3, kind: input, shape index: {}]
  %s4 = inlined_call_operand.vmem [shape: f32[8,24], index: 4, kind: input, shape index: {}]
  %s5 = inlined_call_operand.vmem [shape: f32[8,1], index: 5, kind: input, shape index: {}]
  %s6 = inlined_call_operand.vmem [shape: f32[8,1], index: 6, kind: input, shape index: {}]
  %s7 = inlined_call_operand.hbm [shape: f32[2,8,16], index: 7, kind: output, shape index: {}]
  %s8 = sld [smem:[#allocation0]]
  $region38: #{tpu_custom_call.1} parent=0
    _
  %s10 = ssub.s32 1, %s8
  %s11 = scalar_select 0, %s10, %s8
  $region1: #{tpu_custom_call.1} parent=0
    #allocation2 [shape = 'u8[8192]{0}', space=vmem, size = 0x2000, scoped, tag = 'output window, operand 0, single buffered']
    #allocation3 [shape = 's32[1]{0}', space=sflag, size = 0x4, scoped, tag = 'scoped memory for tpu_custom_call.1']
    %12 = vsyncpa [#allocation3], 0
    // Predicated region
    $region2: #{tpu_custom_call.1} parent=1 // pred_check
      _
    $region3: #{tpu_custom_call.1} parent=1 // pred_check_branch
      %14 = sbr.rel (0) target = $region5
    $region4: #{tpu_custom_call.1} parent=1 // pred_region
      _
    $region5: #{tpu_custom_call.1} parent=1 // pred_fallthru
      _
    // Predicated region
    $region6: #{tpu_custom_call.1} parent=1 // pred_check
      _
    $region7: #{tpu_custom_call.1} parent=1 // pred_check_branch
      %16 = sbr.rel (0) target = $region9
    $region8: #{tpu_custom_call.1} parent=1 // pred_region
      _
    $region9: #{tpu_custom_call.1} parent=1 // pred_fallthru
      _
    // Predicated region
    $region10: #{tpu_custom_call.1} parent=1 // pred_check
      _
    $region11: #{tpu_custom_call.1} parent=1 // pred_check_branch
      %18 = sbr.rel (0) target = $region13
    $region12: #{tpu_custom_call.1} parent=1 // pred_region
      _
    $region13: #{tpu_custom_call.1} parent=1 // pred_fallthru
      _
    // Predicated region
    $region14: #{tpu_custom_call.1} parent=1 // pred_check
      _
    $region15: #{tpu_custom_call.1} parent=1 // pred_check_branch
      %20 = sbr.rel (0) target = $region17
    $region16: #{tpu_custom_call.1} parent=1 // pred_region
      _
    $region17: #{tpu_custom_call.1} parent=1 // pred_fallthru
      _
    // Predicated region
    $region18: #{tpu_custom_call.1} parent=1 // pred_check
      _
    $region19: #{tpu_custom_call.1} parent=1 // pred_check_branch
      %22 = sbr.rel (0) target = $region21
    $region20: #{tpu_custom_call.1} parent=1 // pred_region
      _
    $region21: #{tpu_custom_call.1} parent=1 // pred_fallthru
      _
    // Predicated region
    $region22: #{tpu_custom_call.1} parent=1 // pred_check
      _
    $region23: #{tpu_custom_call.1} parent=1 // pred_check_branch
      %24 = sbr.rel (0) target = $region25
    $region24: #{tpu_custom_call.1} parent=1 // pred_region
      _
    $region25: #{tpu_custom_call.1} parent=1 // pred_fallthru
      _
    // Predicated region
    $region26: #{tpu_custom_call.1} parent=1 // pred_check
      _
    $region27: #{tpu_custom_call.1} parent=1 // pred_check_branch
      %26 = sbr.rel (0) target = $region29
    $region28: #{tpu_custom_call.1} parent=1 // pred_region
      _
    $region29: #{tpu_custom_call.1} parent=1 // pred_fallthru
      _
    %v27 = vld [vmem:[%s1] sm:$0xff]
    %v28 = vld [vmem:[%s4] sm:$0xff]
    %v29 = vld [vmem:[%s0] sm:$0xf]
    %v30 = vlaneseq
    %v31 = vand.u32 %v30, 127
    %vm32 = vcmp.eq.s32.totalorder %v31, 0
    %vm33 = vcmask 1047680
    %34 = vrot.lane.b32.xlu0 %v29, 16
    %v35 = vpop.permute.xlu0 %34
    %v36 = vsel %vm33, %v35, %v29
    %37 = vrot.lane.b32.xlu0 %v36, 16
    %v38 = vpop.permute.xlu0 %37
    %v39 = vsel %vm33, %v38, %v29
    %v40 = vsel %vm32, 1, 0
    %vm41 = vcmp.eq.s32.totalorder %v40, 1
    %43 = vrot.lane.b32.xlu0 %v39, 113
    %v44 = vpop.permute.xlu0 %43
    %v46 = vsel %vm41, 0.0, %v44
    %vm47 = vcmp.eq.s32.totalorder %v31, 15
    %v48 = vsel %vm47, 1, 0
    %vm49 = vcmp.eq.s32.totalorder %v48, 1
    %50 = vrot.lane.b32.xlu0 %v39, 127
    %v51 = vpop.permute.xlu0 %50
    %v53 = vsel %vm49, 0.0, %v51
    %55 = vset.pattern.permute.xlu0 0
    %56 = vperm.xlu0 %55, %v27
    %v57 = vpop.permute.xlu0 %56
    %v59 = vlaneseq
    %v60 = vshrl.u32 %v59, 7
    %v61 = vsub.s32 0, %v60
    %v62 = vrot.slane %v46, %v61
    %v63 = vmul.f32 %v57, %v62
    %64 = vset.pattern.permute.xlu0 1
    %65 = vperm.xlu0 %64, %v27
    %v66 = vpop.permute.xlu0 %65
    %v68 = vlaneseq
    %v69 = vshrl.u32 %v68, 7
    %v70 = vsub.s32 1, %v69
    %v71 = vrot.slane %v46, %v70
    %v72 = vmul.f32 %v66, %v71
    %v73 = vadd.f32 %v63, %v72
    %74 = vset.pattern.permute.xlu0 2
    %75 = vperm.xlu0 %74, %v27
    %v76 = vpop.permute.xlu0 %75
    %v78 = vlaneseq
    %v79 = vshrl.u32 %v78, 7
    %v80 = vsub.s32 2, %v79
    %v81 = vrot.slane %v46, %v80
    %v82 = vmul.f32 %v76, %v81
    %v83 = vadd.f32 %v73, %v82
    %84 = vset.pattern.permute.xlu0 3
    %85 = vperm.xlu0 %84, %v27
    %v86 = vpop.permute.xlu0 %85
    %v88 = vlaneseq
    %v89 = vshrl.u32 %v88, 7
    %v90 = vsub.s32 3, %v89
    %v91 = vrot.slane %v46, %v90
    %v92 = vmul.f32 %v86, %v91
    %v93 = vadd.f32 %v83, %v92
    %94 = vset.pattern.permute.xlu0 4
    %95 = vperm.xlu0 %94, %v27
    %v96 = vpop.permute.xlu0 %95
    %v98 = vlaneseq
    %v99 = vshrl.u32 %v98, 7
    %v100 = vsub.s32 0, %v99
    %v101 = vrot.slane %v29, %v100
    %v102 = vmul.f32 %v96, %v101
    %v103 = vadd.f32 %v93, %v102
    %104 = vset.pattern.permute.xlu0 5
    %105 = vperm.xlu0 %104, %v27
    %v106 = vpop.permute.xlu0 %105
    %v108 = vlaneseq
    %v109 = vshrl.u32 %v108, 7
    %v110 = vsub.s32 1, %v109
    %v111 = vrot.slane %v29, %v110
    %v112 = vmul.f32 %v106, %v111
    %v113 = vadd.f32 %v103, %v112
    %114 = vset.pattern.permute.xlu0 6
    %115 = vperm.xlu0 %114, %v27
    %v116 = vpop.permute.xlu0 %115
    %v118 = vlaneseq
    %v119 = vshrl.u32 %v118, 7
    %v120 = vsub.s32 2, %v119
    %v121 = vrot.slane %v29, %v120
    %v122 = vmul.f32 %v116, %v121
    %v123 = vadd.f32 %v113, %v122
    %124 = vset.pattern.permute.xlu0 7
    %125 = vperm.xlu0 %124, %v27
    %v126 = vpop.permute.xlu0 %125
    %v128 = vlaneseq
    %v129 = vshrl.u32 %v128, 7
    %v130 = vsub.s32 3, %v129
    %v131 = vrot.slane %v29, %v130
    %v132 = vmul.f32 %v126, %v131
    %v133 = vadd.f32 %v123, %v132
    %134 = vset.pattern.permute.xlu0 8
    %135 = vperm.xlu0 %134, %v27
    %v136 = vpop.permute.xlu0 %135
    %v138 = vlaneseq
    %v139 = vshrl.u32 %v138, 7
    %v140 = vsub.s32 0, %v139
    %v141 = vrot.slane %v53, %v140
    %v142 = vmul.f32 %v136, %v141
    %v143 = vadd.f32 %v133, %v142
    %144 = vset.pattern.permute.xlu0 9
    %145 = vperm.xlu0 %144, %v27
    %v146 = vpop.permute.xlu0 %145
    %v148 = vlaneseq
    %v149 = vshrl.u32 %v148, 7
    %v150 = vsub.s32 1, %v149
    %v151 = vrot.slane %v53, %v150
    %v152 = vmul.f32 %v146, %v151
    %v153 = vadd.f32 %v143, %v152
    %154 = vset.pattern.permute.xlu0 10
    %155 = vperm.xlu0 %154, %v27
    %v156 = vpop.permute.xlu0 %155
    %v158 = vlaneseq
    %v159 = vshrl.u32 %v158, 7
    %v160 = vsub.s32 2, %v159
    %v161 = vrot.slane %v53, %v160
    %v162 = vmul.f32 %v156, %v161
    %v163 = vadd.f32 %v153, %v162
    %164 = vset.pattern.permute.xlu0 11
    %165 = vperm.xlu0 %164, %v27
    %v166 = vpop.permute.xlu0 %165
    %v168 = vlaneseq
    %v169 = vshrl.u32 %v168, 7
    %v170 = vsub.s32 3, %v169
    %v171 = vrot.slane %v53, %v170
    %v172 = vmul.f32 %v166, %v171
    %v173 = vadd.f32 %v163, %v172
    %vm174 = vcmask 130048
    %v175 = vsel %vm174, %v173, 0.0
    %176 = vadd.xlane.f32.xlu0 %v175
    %v177 = vpop.xlane.xlu0 %176
    %v178 = vadd.f32 %v177, 0.0
    %v179 = vmul.f32 %v173, %v173
    %v180 = vsel %vm174, %v179, 0.0
    %181 = vadd.xlane.f32.xlu0 %v180
    %v182 = vpop.xlane.xlu0 %181
    %v183 = vadd.f32 %v182, 0.0
    %s184 = scalar_lea.vmem %s0, 4
    %v185 = vld [vmem:[%s184] sm:$0xf]
    %186 = vrot.lane.b32.xlu0 %v185, 16
    %v187 = vpop.permute.xlu0 %186
    %v188 = vsel %vm33, %v187, %v185
    %189 = vrot.lane.b32.xlu0 %v188, 16
    %v190 = vpop.permute.xlu0 %189
    %v191 = vsel %vm33, %v190, %v185
    %193 = vrot.lane.b32.xlu0 %v191, 113
    %v194 = vpop.permute.xlu0 %193
    %v196 = vsel %vm41, 0.0, %v194
    %197 = vrot.lane.b32.xlu0 %v191, 127
    %v198 = vpop.permute.xlu0 %197
    %v200 = vsel %vm49, 0.0, %v198
    %v201 = vlaneseq
    %v202 = vshrl.u32 %v201, 7
    %v203 = vsub.s32 0, %v202
    %v204 = vrot.slane %v196, %v203
    %v205 = vmul.f32 %v57, %v204
    %v206 = vlaneseq
    %v207 = vshrl.u32 %v206, 7
    %v208 = vsub.s32 1, %v207
    %v209 = vrot.slane %v196, %v208
    %v210 = vmul.f32 %v66, %v209
    %v211 = vadd.f32 %v205, %v210
    %v212 = vlaneseq
    %v213 = vshrl.u32 %v212, 7
    %v214 = vsub.s32 2, %v213
    %v215 = vrot.slane %v196, %v214
    %v216 = vmul.f32 %v76, %v215
    %v217 = vadd.f32 %v211, %v216
    %v218 = vlaneseq
    %v219 = vshrl.u32 %v218, 7
    %v220 = vsub.s32 3, %v219
    %v221 = vrot.slane %v196, %v220
    %v222 = vmul.f32 %v86, %v221
    %v223 = vadd.f32 %v217, %v222
    %v224 = vlaneseq
    %v225 = vshrl.u32 %v224, 7
    %v226 = vsub.s32 0, %v225
    %v227 = vrot.slane %v185, %v226
    %v228 = vmul.f32 %v96, %v227
    %v229 = vadd.f32 %v223, %v228
    %v230 = vlaneseq
    %v231 = vshrl.u32 %v230, 7
    %v232 = vsub.s32 1, %v231
    %v233 = vrot.slane %v185, %v232
    %v234 = vmul.f32 %v106, %v233
    %v235 = vadd.f32 %v229, %v234
    %v236 = vlaneseq
    %v237 = vshrl.u32 %v236, 7
    %v238 = vsub.s32 2, %v237
    %v239 = vrot.slane %v185, %v238
    %v240 = vmul.f32 %v116, %v239
    %v241 = vadd.f32 %v235, %v240
    %v242 = vlaneseq
    %v243 = vshrl.u32 %v242, 7
    %v244 = vsub.s32 3, %v243
    %v245 = vrot.slane %v185, %v244
    %v246 = vmul.f32 %v126, %v245
    %v247 = vadd.f32 %v241, %v246
    %v248 = vlaneseq
    %v249 = vshrl.u32 %v248, 7
    %v250 = vsub.s32 0, %v249
    %v251 = vrot.slane %v200, %v250
    %v252 = vmul.f32 %v136, %v251
    %v253 = vadd.f32 %v247, %v252
    %v254 = vlaneseq
    %v255 = vshrl.u32 %v254, 7
    %v256 = vsub.s32 1, %v255
    %v257 = vrot.slane %v200, %v256
    %v258 = vmul.f32 %v146, %v257
    %v259 = vadd.f32 %v253, %v258
    %v260 = vlaneseq
    %v261 = vshrl.u32 %v260, 7
    %v262 = vsub.s32 2, %v261
    %v263 = vrot.slane %v200, %v262
    %v264 = vmul.f32 %v156, %v263
    %v265 = vadd.f32 %v259, %v264
    %v266 = vlaneseq
    %v267 = vshrl.u32 %v266, 7
    %v268 = vsub.s32 3, %v267
    %v269 = vrot.slane %v200, %v268
    %v270 = vmul.f32 %v166, %v269
    %v271 = vadd.f32 %v265, %v270
    %v272 = vsel %vm174, %v271, 0.0
    %273 = vadd.xlane.f32.xlu0 %v272
    %v274 = vpop.xlane.xlu0 %273
    %v275 = vadd.f32 %v178, %v274
    %v276 = vmul.f32 %v271, %v271
    %v277 = vsel %vm174, %v276, 0.0
    %278 = vadd.xlane.f32.xlu0 %v277
    %v279 = vpop.xlane.xlu0 %278
    %v280 = vadd.f32 %v183, %v279
    %v281 = vld [vmem:[%s2] sm:$0xff]
    %v282 = vld [vmem:[%s3] sm:$0xff]
    %v283 = vrcp.pop 32.0
    %v284 = vmul.f32 %v275, %v283
    %v285 = vmul.f32 %v280, %v283
    %v286 = vmul.f32 %v284, %v284
    %v287 = vsub.f32 %v285, %v286
    %v288 = vmax.f32 %v287, 0.0
    %v289 = vadd.f32 %v288, 1e-05
    %v290 = vrsqrt.pop %v289
    %v291 = vmul.f32 %v281, %v290
    %v292 = vmul.f32 %v284, %v291
    %v293 = vsub.f32 %v282, %v292
    %295 = vset.pattern.permute.xlu0 0
    %296 = vperm.xlu0 %295, %v291
    %v297 = vpop.permute.xlu0 %296
    %v299 = vmul.f32 %v173, %v297
    %301 = vset.pattern.permute.xlu0 0
    %302 = vperm.xlu0 %301, %v293
    %v303 = vpop.permute.xlu0 %302
    %v305 = vadd.f32 %v299, %v303
    %v306 = vmax.f32 %v305, 0.0
    %307 = vrot.lane.b32.xlu0 %v306, 16
    %v308 = vpop.permute.xlu0 %307
    %v309 = vsel %vm33, %v308, %v306
    %310 = vrot.lane.b32.xlu0 %v309, 16
    %v311 = vpop.permute.xlu0 %310
    %v312 = vsel %vm33, %v311, %v306
    %314 = vrot.lane.b32.xlu0 %v312, 113
    %v315 = vpop.permute.xlu0 %314
    %v317 = vsel %vm41, 0.0, %v315
    %318 = vrot.lane.b32.xlu0 %v312, 127
    %v319 = vpop.permute.xlu0 %318
    %v321 = vsel %vm49, 0.0, %v319
    %323 = vset.pattern.permute.xlu0 0
    %324 = vperm.xlu0 %323, %v28
    %v325 = vpop.permute.xlu0 %324
    %v327 = vlaneseq
    %v328 = vshrl.u32 %v327, 7
    %v329 = vsub.s32 0, %v328
    %v330 = vrot.slane %v317, %v329
    %v331 = vmul.f32 %v325, %v330
    %332 = vset.pattern.permute.xlu0 1
    %333 = vperm.xlu0 %332, %v28
    %v334 = vpop.permute.xlu0 %333
    %v336 = vlaneseq
    %v337 = vshrl.u32 %v336, 7
    %v338 = vsub.s32 1, %v337
    %v339 = vrot.slane %v317, %v338
    %v340 = vmul.f32 %v334, %v339
    %v341 = vadd.f32 %v331, %v340
    %342 = vset.pattern.permute.xlu0 2
    %343 = vperm.xlu0 %342, %v28
    %v344 = vpop.permute.xlu0 %343
    %v346 = vlaneseq
    %v347 = vshrl.u32 %v346, 7
    %v348 = vsub.s32 2, %v347
    %v349 = vrot.slane %v317, %v348
    %v350 = vmul.f32 %v344, %v349
    %v351 = vadd.f32 %v341, %v350
    %352 = vset.pattern.permute.xlu0 3
    %353 = vperm.xlu0 %352, %v28
    %v354 = vpop.permute.xlu0 %353
    %v356 = vlaneseq
    %v357 = vshrl.u32 %v356, 7
    %v358 = vsub.s32 3, %v357
    %v359 = vrot.slane %v317, %v358
    %v360 = vmul.f32 %v354, %v359
    %v361 = vadd.f32 %v351, %v360
    %362 = vset.pattern.permute.xlu0 4
    %363 = vperm.xlu0 %362, %v28
    %v364 = vpop.permute.xlu0 %363
    %v366 = vlaneseq
    %v367 = vshrl.u32 %v366, 7
    %v368 = vsub.s32 4, %v367
    %v369 = vrot.slane %v317, %v368
    %v370 = vmul.f32 %v364, %v369
    %v371 = vadd.f32 %v361, %v370
    %372 = vset.pattern.permute.xlu0 5
    %373 = vperm.xlu0 %372, %v28
    %v374 = vpop.permute.xlu0 %373
    %v376 = vlaneseq
    %v377 = vshrl.u32 %v376, 7
    %v378 = vsub.s32 5, %v377
    %v379 = vrot.slane %v317, %v378
    %v380 = vmul.f32 %v374, %v379
    %v381 = vadd.f32 %v371, %v380
    %382 = vset.pattern.permute.xlu0 6
    %383 = vperm.xlu0 %382, %v28
    %v384 = vpop.permute.xlu0 %383
    %v386 = vlaneseq
    %v387 = vshrl.u32 %v386, 7
    %v388 = vsub.s32 6, %v387
    %v389 = vrot.slane %v317, %v388
    %v390 = vmul.f32 %v384, %v389
    %v391 = vadd.f32 %v381, %v390
    %392 = vset.pattern.permute.xlu0 7
    %393 = vperm.xlu0 %392, %v28
    %v394 = vpop.permute.xlu0 %393
    %v396 = vlaneseq
    %v397 = vshrl.u32 %v396, 7
    %v398 = vsub.s32 7, %v397
    %v399 = vrot.slane %v317, %v398
    %v400 = vmul.f32 %v394, %v399
    %v401 = vadd.f32 %v391, %v400
    %402 = vset.pattern.permute.xlu0 8
    %403 = vperm.xlu0 %402, %v28
    %v404 = vpop.permute.xlu0 %403
    %v406 = vlaneseq
    %v407 = vshrl.u32 %v406, 7
    %v408 = vsub.s32 0, %v407
    %v409 = vrot.slane %v306, %v408
    %v410 = vmul.f32 %v404, %v409
    %v411 = vadd.f32 %v401, %v410
    %412 = vset.pattern.permute.xlu0 9
    %413 = vperm.xlu0 %412, %v28
    %v414 = vpop.permute.xlu0 %413
    %v416 = vlaneseq
    %v417 = vshrl.u32 %v416, 7
    %v418 = vsub.s32 1, %v417
    %v419 = vrot.slane %v306, %v418
    %v420 = vmul.f32 %v414, %v419
    %v421 = vadd.f32 %v411, %v420
    %422 = vset.pattern.permute.xlu0 10
    %423 = vperm.xlu0 %422, %v28
    %v424 = vpop.permute.xlu0 %423
    %v426 = vlaneseq
    %v427 = vshrl.u32 %v426, 7
    %v428 = vsub.s32 2, %v427
    %v429 = vrot.slane %v306, %v428
    %v430 = vmul.f32 %v424, %v429
    %v431 = vadd.f32 %v421, %v430
    %432 = vset.pattern.permute.xlu0 11
    %433 = vperm.xlu0 %432, %v28
    %v434 = vpop.permute.xlu0 %433
    %v436 = vlaneseq
    %v437 = vshrl.u32 %v436, 7
    %v438 = vsub.s32 3, %v437
    %v439 = vrot.slane %v306, %v438
    %v440 = vmul.f32 %v434, %v439
    %v441 = vadd.f32 %v431, %v440
    %442 = vset.pattern.permute.xlu0 12
    %443 = vperm.xlu0 %442, %v28
    %v444 = vpop.permute.xlu0 %443
    %v446 = vlaneseq
    %v447 = vshrl.u32 %v446, 7
    %v448 = vsub.s32 4, %v447
    %v449 = vrot.slane %v306, %v448
    %v450 = vmul.f32 %v444, %v449
    %v451 = vadd.f32 %v441, %v450
    %452 = vset.pattern.permute.xlu0 13
    %453 = vperm.xlu0 %452, %v28
    %v454 = vpop.permute.xlu0 %453
    %v456 = vlaneseq
    %v457 = vshrl.u32 %v456, 7
    %v458 = vsub.s32 5, %v457
    %v459 = vrot.slane %v306, %v458
    %v460 = vmul.f32 %v454, %v459
    %v461 = vadd.f32 %v451, %v460
    %462 = vset.pattern.permute.xlu0 14
    %463 = vperm.xlu0 %462, %v28
    %v464 = vpop.permute.xlu0 %463
    %v466 = vlaneseq
    %v467 = vshrl.u32 %v466, 7
    %v468 = vsub.s32 6, %v467
    %v469 = vrot.slane %v306, %v468
    %v470 = vmul.f32 %v464, %v469
    %v471 = vadd.f32 %v461, %v470
    %472 = vset.pattern.permute.xlu0 15
    %473 = vperm.xlu0 %472, %v28
    %v474 = vpop.permute.xlu0 %473
    %v476 = vlaneseq
    %v477 = vshrl.u32 %v476, 7
    %v478 = vsub.s32 7, %v477
    %v479 = vrot.slane %v306, %v478
    %v480 = vmul.f32 %v474, %v479
    %v481 = vadd.f32 %v471, %v480
    %482 = vset.pattern.permute.xlu0 16
    %483 = vperm.xlu0 %482, %v28
    %v484 = vpop.permute.xlu0 %483
    %v486 = vlaneseq
    %v487 = vshrl.u32 %v486, 7
    %v488 = vsub.s32 0, %v487
    %v489 = vrot.slane %v321, %v488
    %v490 = vmul.f32 %v484, %v489
    %v491 = vadd.f32 %v481, %v490
    %492 = vset.pattern.permute.xlu0 17
    %493 = vperm.xlu0 %492, %v28
    %v494 = vpop.permute.xlu0 %493
    %v496 = vlaneseq
    %v497 = vshrl.u32 %v496, 7
    %v498 = vsub.s32 1, %v497
    %v499 = vrot.slane %v321, %v498
    %v500 = vmul.f32 %v494, %v499
    %v501 = vadd.f32 %v491, %v500
    %502 = vset.pattern.permute.xlu0 18
    %503 = vperm.xlu0 %502, %v28
    %v504 = vpop.permute.xlu0 %503
    %v506 = vlaneseq
    %v507 = vshrl.u32 %v506, 7
    %v508 = vsub.s32 2, %v507
    %v509 = vrot.slane %v321, %v508
    %v510 = vmul.f32 %v504, %v509
    %v511 = vadd.f32 %v501, %v510
    %512 = vset.pattern.permute.xlu0 19
    %513 = vperm.xlu0 %512, %v28
    %v514 = vpop.permute.xlu0 %513
    %v516 = vlaneseq
    %v517 = vshrl.u32 %v516, 7
    %v518 = vsub.s32 3, %v517
    %v519 = vrot.slane %v321, %v518
    %v520 = vmul.f32 %v514, %v519
    %v521 = vadd.f32 %v511, %v520
    %522 = vset.pattern.permute.xlu0 20
    %523 = vperm.xlu0 %522, %v28
    %v524 = vpop.permute.xlu0 %523
    %v526 = vlaneseq
    %v527 = vshrl.u32 %v526, 7
    %v528 = vsub.s32 4, %v527
    %v529 = vrot.slane %v321, %v528
    %v530 = vmul.f32 %v524, %v529
    %v531 = vadd.f32 %v521, %v530
    %532 = vset.pattern.permute.xlu0 21
    %533 = vperm.xlu0 %532, %v28
    %v534 = vpop.permute.xlu0 %533
    %v536 = vlaneseq
    %v537 = vshrl.u32 %v536, 7
    %v538 = vsub.s32 5, %v537
    %v539 = vrot.slane %v321, %v538
    %v540 = vmul.f32 %v534, %v539
    %v541 = vadd.f32 %v531, %v540
    %542 = vset.pattern.permute.xlu0 22
    %543 = vperm.xlu0 %542, %v28
    %v544 = vpop.permute.xlu0 %543
    %v546 = vlaneseq
    %v547 = vshrl.u32 %v546, 7
    %v548 = vsub.s32 6, %v547
    %v549 = vrot.slane %v321, %v548
    %v550 = vmul.f32 %v544, %v549
    %v551 = vadd.f32 %v541, %v550
    %552 = vset.pattern.permute.xlu0 23
    %553 = vperm.xlu0 %552, %v28
    %v554 = vpop.permute.xlu0 %553
    %v556 = vlaneseq
    %v557 = vshrl.u32 %v556, 7
    %v558 = vsub.s32 7, %v557
    %v559 = vrot.slane %v321, %v558
    %v560 = vmul.f32 %v554, %v559
    %v561 = vadd.f32 %v551, %v560
    %v562 = vsel %vm174, %v561, 0.0
    %563 = vadd.xlane.f32.xlu0 %v562
    %v564 = vpop.xlane.xlu0 %563
    %v565 = vadd.f32 %v564, 0.0
    %v566 = vmul.f32 %v561, %v561
    %v567 = vsel %vm174, %v566, 0.0
    %568 = vadd.xlane.f32.xlu0 %v567
    %v569 = vpop.xlane.xlu0 %568
    %v570 = vadd.f32 %v569, 0.0
    %v571 = vmul.f32 %v271, %v297
    %v572 = vadd.f32 %v571, %v303
    %v573 = vmax.f32 %v572, 0.0
    %574 = vrot.lane.b32.xlu0 %v573, 16
    %v575 = vpop.permute.xlu0 %574
    %v576 = vsel %vm33, %v575, %v573
    %577 = vrot.lane.b32.xlu0 %v576, 16
    %v578 = vpop.permute.xlu0 %577
    %v579 = vsel %vm33, %v578, %v573
    %581 = vrot.lane.b32.xlu0 %v579, 113
    %v582 = vpop.permute.xlu0 %581
    %v584 = vsel %vm41, 0.0, %v582
    %585 = vrot.lane.b32.xlu0 %v579, 127
    %v586 = vpop.permute.xlu0 %585
    %v588 = vsel %vm49, 0.0, %v586
    %v589 = vlaneseq
    %v590 = vshrl.u32 %v589, 7
    %v591 = vsub.s32 0, %v590
    %v592 = vrot.slane %v584, %v591
    %v593 = vmul.f32 %v325, %v592
    %v594 = vlaneseq
    %v595 = vshrl.u32 %v594, 7
    %v596 = vsub.s32 1, %v595
    %v597 = vrot.slane %v584, %v596
    %v598 = vmul.f32 %v334, %v597
    %v599 = vadd.f32 %v593, %v598
    %v600 = vlaneseq
    %v601 = vshrl.u32 %v600, 7
    %v602 = vsub.s32 2, %v601
    %v603 = vrot.slane %v584, %v602
    %v604 = vmul.f32 %v344, %v603
    %v605 = vadd.f32 %v599, %v604
    %v606 = vlaneseq
    %v607 = vshrl.u32 %v606, 7
    %v608 = vsub.s32 3, %v607
    %v609 = vrot.slane %v584, %v608
    %v610 = vmul.f32 %v354, %v609
    %v611 = vadd.f32 %v605, %v610
    %v612 = vlaneseq
    %v613 = vshrl.u32 %v612, 7
    %v614 = vsub.s32 4, %v613
    %v615 = vrot.slane %v584, %v614
    %v616 = vmul.f32 %v364, %v615
    %v617 = vadd.f32 %v611, %v616
    %v618 = vlaneseq
    %v619 = vshrl.u32 %v618, 7
    %v620 = vsub.s32 5, %v619
    %v621 = vrot.slane %v584, %v620
    %v622 = vmul.f32 %v374, %v621
    %v623 = vadd.f32 %v617, %v622
    %v624 = vlaneseq
    %v625 = vshrl.u32 %v624, 7
    %v626 = vsub.s32 6, %v625
    %v627 = vrot.slane %v584, %v626
    %v628 = vmul.f32 %v384, %v627
    %v629 = vadd.f32 %v623, %v628
    %v630 = vlaneseq
    %v631 = vshrl.u32 %v630, 7
    %v632 = vsub.s32 7, %v631
    %v633 = vrot.slane %v584, %v632
    %v634 = vmul.f32 %v394, %v633
    %v635 = vadd.f32 %v629, %v634
    %v636 = vlaneseq
    %v637 = vshrl.u32 %v636, 7
    %v638 = vsub.s32 0, %v637
    %v639 = vrot.slane %v573, %v638
    %v640 = vmul.f32 %v404, %v639
    %v641 = vadd.f32 %v635, %v640
    %v642 = vlaneseq
    %v643 = vshrl.u32 %v642, 7
    %v644 = vsub.s32 1, %v643
    %v645 = vrot.slane %v573, %v644
    %v646 = vmul.f32 %v414, %v645
    %v647 = vadd.f32 %v641, %v646
    %v648 = vlaneseq
    %v649 = vshrl.u32 %v648, 7
    %v650 = vsub.s32 2, %v649
    %v651 = vrot.slane %v573, %v650
    %v652 = vmul.f32 %v424, %v651
    %v653 = vadd.f32 %v647, %v652
    %v654 = vlaneseq
    %v655 = vshrl.u32 %v654, 7
    %v656 = vsub.s32 3, %v655
    %v657 = vrot.slane %v573, %v656
    %v658 = vmul.f32 %v434, %v657
    %v659 = vadd.f32 %v653, %v658
    %v660 = vlaneseq
    %v661 = vshrl.u32 %v660, 7
    %v662 = vsub.s32 4, %v661
    %v663 = vrot.slane %v573, %v662
    %v664 = vmul.f32 %v444, %v663
    %v665 = vadd.f32 %v659, %v664
    %v666 = vlaneseq
    %v667 = vshrl.u32 %v666, 7
    %v668 = vsub.s32 5, %v667
    %v669 = vrot.slane %v573, %v668
    %v670 = vmul.f32 %v454, %v669
    %v671 = vadd.f32 %v665, %v670
    %v672 = vlaneseq
    %v673 = vshrl.u32 %v672, 7
    %v674 = vsub.s32 6, %v673
    %v675 = vrot.slane %v573, %v674
    %v676 = vmul.f32 %v464, %v675
    %v677 = vadd.f32 %v671, %v676
    %v678 = vlaneseq
    %v679 = vshrl.u32 %v678, 7
    %v680 = vsub.s32 7, %v679
    %v681 = vrot.slane %v573, %v680
    %v682 = vmul.f32 %v474, %v681
    %v683 = vadd.f32 %v677, %v682
    %v684 = vlaneseq
    %v685 = vshrl.u32 %v684, 7
    %v686 = vsub.s32 0, %v685
    %v687 = vrot.slane %v588, %v686
    %v688 = vmul.f32 %v484, %v687
    %v689 = vadd.f32 %v683, %v688
    %v690 = vlaneseq
    %v691 = vshrl.u32 %v690, 7
    %v692 = vsub.s32 1, %v691
    %v693 = vrot.slane %v588, %v692
    %v694 = vmul.f32 %v494, %v693
    %v695 = vadd.f32 %v689, %v694
    %v696 = vlaneseq
    %v697 = vshrl.u32 %v696, 7
    %v698 = vsub.s32 2, %v697
    %v699 = vrot.slane %v588, %v698
    %v700 = vmul.f32 %v504, %v699
    %v701 = vadd.f32 %v695, %v700
    %v702 = vlaneseq
    %v703 = vshrl.u32 %v702, 7
    %v704 = vsub.s32 3, %v703
    %v705 = vrot.slane %v588, %v704
    %v706 = vmul.f32 %v514, %v705
    %v707 = vadd.f32 %v701, %v706
    %v708 = vlaneseq
    %v709 = vshrl.u32 %v708, 7
    %v710 = vsub.s32 4, %v709
    %v711 = vrot.slane %v588, %v710
    %v712 = vmul.f32 %v524, %v711
    %v713 = vadd.f32 %v707, %v712
    %v714 = vlaneseq
    %v715 = vshrl.u32 %v714, 7
    %v716 = vsub.s32 5, %v715
    %v717 = vrot.slane %v588, %v716
    %v718 = vmul.f32 %v534, %v717
    %v719 = vadd.f32 %v713, %v718
    %v720 = vlaneseq
    %v721 = vshrl.u32 %v720, 7
    %v722 = vsub.s32 6, %v721
    %v723 = vrot.slane %v588, %v722
    %v724 = vmul.f32 %v544, %v723
    %v725 = vadd.f32 %v719, %v724
    %v726 = vlaneseq
    %v727 = vshrl.u32 %v726, 7
    %v728 = vsub.s32 7, %v727
    %v729 = vrot.slane %v588, %v728
    %v730 = vmul.f32 %v554, %v729
    %v731 = vadd.f32 %v725, %v730
    %v732 = vsel %vm174, %v731, 0.0
    %733 = vadd.xlane.f32.xlu0 %v732
    %v734 = vpop.xlane.xlu0 %733
    %v735 = vadd.f32 %v565, %v734
    %v736 = vmul.f32 %v731, %v731
    %v737 = vsel %vm174, %v736, 0.0
    %738 = vadd.xlane.f32.xlu0 %v737
    %v739 = vpop.xlane.xlu0 %738
    %v740 = vadd.f32 %v570, %v739
    %v741 = vld [vmem:[%s5] sm:$0xff]
    %v742 = vld [vmem:[%s6] sm:$0xff]
    %v743 = vmul.f32 %v735, %v283
    %v744 = vmul.f32 %v740, %v283
    %v745 = vmul.f32 %v743, %v743
    %v746 = vsub.f32 %v744, %v745
    %v747 = vmax.f32 %v746, 0.0
    %v748 = vadd.f32 %v747, 1e-05
    %v749 = vrsqrt.pop %v748
    %v750 = vmul.f32 %v741, %v749
    %v751 = vmul.f32 %v743, %v750
    %v752 = vsub.f32 %v742, %v751
    %754 = vset.pattern.permute.xlu0 0
    %755 = vperm.xlu0 %754, %v750
    %v756 = vpop.permute.xlu0 %755
    %v758 = vmul.f32 %v561, %v756
    %760 = vset.pattern.permute.xlu0 0
    %761 = vperm.xlu0 %760, %v752
    %v762 = vpop.permute.xlu0 %761
    %v764 = vadd.f32 %v758, %v762
    %v765 = vmax.f32 %v764, 0.0
    %766 = vst.msk [vmem:[#allocation2] sm:$0xff] %vm174, %v765
    %v767 = vmul.f32 %v731, %v756
    %v768 = vadd.f32 %v767, %v762
    %v769 = vmax.f32 %v768, 0.0
    %s770 = scalar_lea.vmem [#allocation2], 8
    %771 = vst.msk [vmem:[%s770] sm:$0xff] %vm174, %v769
    // Predicated region
    $region30: #{tpu_custom_call.1} parent=1 // pred_check
      _
    $region31: #{tpu_custom_call.1} parent=1 // pred_check_branch
      %773 = sbr.rel (0) target = $region33
    $region32: #{tpu_custom_call.1} parent=1 // pred_region
      %s775 = ssub.s32 256, 256
      %776 = vsyncadd [#allocation3], %s775
      %s777 = sshll.u32 [#allocation2], 4
      %s778 = int_to_ptr.vmem [resolvable:$true] %s777
      %783 = dma.vmem_to_hbm [thread:$0]  %s778, 256, %s7, [#allocation3], 128, 128, 8
    $region33: #{tpu_custom_call.1} parent=1 // pred_fallthru
      _
    // Predicated region
    $region34: #{tpu_custom_call.1} parent=1 // pred_check
      _
    $region35: #{tpu_custom_call.1} parent=1 // pred_check_branch
      %785 = sbr.rel (0) target = $region37
    $region36: #{tpu_custom_call.1} parent=1 // pred_region
      %786 = dma.done [#allocation3], 256
    $region37: #{tpu_custom_call.1} parent=1 // pred_fallthru
      _
    %787 = vsyncpa [#allocation3], 1

</llo_original>
